<compile_context>
chip_gen: v6e
topology: v6e:2x2x1
jax: 0.10.0
libtpu: 0.0.40
codegen_flags: <defaults>
</compile_context>

<pallas_src>
import functools

import jax
import jax.numpy as jnp
from jax.experimental import pallas as pl
from jax.experimental.pallas import tpu as pltpu


def _head_kernel(x_ref, w_ref, b_ref, o_ref, *, block_c):
    """Fused global-avg-pool + linear.

    x_ref : (Bb, Ct, HW)  feature-map tile, HW on lanes
    w_ref : (C, Np)       full fc weight (1/HW folded in), resident in VMEM
    b_ref : (1, Np)       fc bias (f32, padded)
    o_ref : (Bb, Np)      f32 logits block, resident across the C axis (accumulator)
    """
    k = pl.program_id(1)

    @pl.when(k == 0)
    def _():
        # Initialize the resident output block with the bias -> no finalize add.
        o_ref[...] = jnp.broadcast_to(b_ref[...], o_ref.shape)

    # Spatial sum over HW (lane axis, XLU reduce), accumulated in f32 without
    # keeping a full-width f32 copy of the tile alive.
    pooled = jnp.sum(x_ref[...], axis=-1, dtype=jnp.float32)          # (Bb, Ct)

    # Slice this step's C tile out of the resident weight.
    c_off = pl.multiple_of(k * block_c, block_c)
    w_blk = w_ref[pl.ds(c_off, block_c), :]                           # (Ct, Np)

    # MXU matmul in the weight dtype (bf16) with f32 accumulation directly into
    # the resident f32 output block. pooled is rounded to bf16 here (intentional).
    o_ref[...] += jnp.dot(pooled.astype(w_ref.dtype), w_blk,
                          preferred_element_type=jnp.float32)


@functools.partial(jax.jit, static_argnames=("block_c", "block_b"))
def resnext_head(feat_nchw, fc_weight, fc_bias, *, block_c=None, block_b=None):
    """feat_nchw: (B, C, H, W); fc_weight: (num_classes, C); fc_bias: (num_classes,)."""
    B, C, H, W = feat_nchw.shape
    N = fc_weight.shape[0]
    HW = H * W

    if block_b is None:
        # v7x: at realistic batch choose block_b = B // 2 (multiple of 8) so the
        # "parallel" batch axis has >= 2 steps and both TensorCores are used.
        block_b = B
    if block_c is None:
        block_c = min(C, 512)   # keeps double-buffered x tile VMEM-safe on v7x (64 MiB)
    assert C % block_c == 0 and block_c % 128 == 0
    assert B % block_b == 0 and (block_b == B or block_b % 8 == 0)

    # Free reshape only — no transpose, no extra HBM pass over the feature map.
    x = feat_nchw.reshape(B, C, HW)                                    # (B, C, HW)

    # Pad the class dimension up to a lane-dense multiple of 128 and fold 1/HW
    # into the weight so the kernel only accumulates (sum-pool @ W).
    n_pad = max(128, ((N + 127) // 128) * 128)
    w_t = (fc_weight.T.astype(jnp.float32) / HW).astype(feat_nchw.dtype)   # (C, N)
    if n_pad != N:
        w_t = jnp.pad(w_t, ((0, 0), (0, n_pad - N)))
    b2d = jnp.pad(fc_bias.astype(jnp.float32), (0, n_pad - N)).reshape(1, n_pad)

    # Explicit VMEM budget (scoped default is 32 MiB; v7x physical is 64 MiB).
    hw_pad = ((HW + 127) // 128) * 128                  # lane padding of the x tile
    x_blk_bytes = block_b * block_c * hw_pad * x.dtype.itemsize
    w_bytes = C * n_pad * w_t.dtype.itemsize
    o_bytes = block_b * n_pad * 4
    est = 2 * x_blk_bytes + 2 * w_bytes + 2 * o_bytes + 2 * 8 * n_pad * 4 + (2 << 20)
    vmem_limit = int(min(max(est, 32 << 20), 64 << 20))

    grid = (B // block_b, C // block_c)
    out_padded = pl.pallas_call(
        functools.partial(_head_kernel, block_c=block_c),
        out_shape=jax.ShapeDtypeStruct((B, n_pad), jnp.float32),
        grid_spec=pltpu.PrefetchScalarGridSpec(
            num_scalar_prefetch=0,
            grid=grid,
            in_specs=[
                # feature-map tile: batch x C-tile, full HW extent on lanes
                pl.BlockSpec((block_b, block_c, HW), lambda b, k: (b, k, 0)),
                # full fc weight, resident (constant block index -> fetched once)
                pl.BlockSpec((C, n_pad), lambda b, k: (0, 0)),
                # bias, resident
                pl.BlockSpec((1, n_pad), lambda b, k: (0, 0)),
            ],
            out_specs=pl.BlockSpec((block_b, n_pad), lambda b, k: (b, 0)),
        ),
        compiler_params=pltpu.CompilerParams(
            dimension_semantics=("parallel", "arbitrary"),
            vmem_limit_bytes=vmem_limit,
        ),
        cost_estimate=pl.CostEstimate(
            flops=2 * B * C * n_pad + B * C * HW,
            transcendentals=0,
            bytes_accessed=(x.size * x.dtype.itemsize
                            + w_t.size * w_t.dtype.itemsize
                            + B * n_pad * 4),
        ),
    )(x, w_t, b2d)
    return out_padded[:, :N]


if __name__ == "__main__":
    key = jax.random.PRNGKey(0)
    k_feat, k_w, k_b = jax.random.split(key, 3)

    # Backbone output has 2048 channels (fc in_features); tiny batch / spatial extent.
    B, C, H, W = 2, 2048, 4, 4
    num_classes = 10

    # Backbone activations kept in bf16 (no wrapper upcast of the big tensor).
    feat = jax.random.normal(k_feat, (B, C, H, W), dtype=jnp.float32).astype(jnp.bfloat16)

    # nn.Linear(2048, num_classes) deterministic init (uniform +/- 1/sqrt(in_features)).
    bound = 1.0 / jnp.sqrt(jnp.float32(C))
    fc_weight = jax.random.uniform(k_w, (num_classes, C), minval=-bound, maxval=bound,
                                   dtype=jnp.float32)
    fc_bias = jax.random.uniform(k_b, (num_classes,), minval=-bound, maxval=bound,
                                 dtype=jnp.float32)

    out = resnext_head(feat, fc_weight, fc_bias)
    out = jax.block_until_ready(out)

    # Pure-JAX f32 reference of the module's forward (post-backbone).
    ref = jnp.mean(feat.astype(jnp.float32), axis=(2, 3)) @ fc_weight.T + fc_bias
    assert out.shape == (B, num_classes)
    assert jnp.allclose(out, ref, atol=2e-2, rtol=2e-2), "mismatch vs reference"

    print("KERNEL_OK")
</pallas_src>

<mosaic_0001>
module attributes {stable_mosaic.version = 11 : i64} {
  func.func @_head_kernel(%arg0: i32, %arg1: i32, %arg2: memref<2x512x16xbf16, #tpu.memory_space<vmem>>, %arg3: memref<2048x128xbf16, #tpu.memory_space<vmem>>, %arg4: memref<1x128xf32, #tpu.memory_space<vmem>>, %arg5: memref<2x128xf32, #tpu.memory_space<vmem>>) attributes {dimension_semantics = [#tpu.dimension_semantics<parallel>, #tpu.dimension_semantics<arbitrary>], iteration_bounds = array<i64: 1, 4>, scalar_prefetch = 0 : i64, scratch_operands = 0 : i64, tpu.core_type = #tpu.core_type<tc>, window_params = [{transform_indices = @transform_0, window_bounds = array<i64: 2, 512, 16>}, {pipeline_mode = #tpu.pipeline_mode<synchronous>, transform_indices = @transform_1, window_bounds = array<i64: 2048, 128>}, {pipeline_mode = #tpu.pipeline_mode<synchronous>, transform_indices = @transform_2, window_bounds = array<i64: 1, 128>}, {transform_indices = @transform_3, window_bounds = array<i64: 2, 128>}]} {
    %c0_i32 = arith.constant 0 : i32
    %0 = arith.cmpi eq, %arg1, %c0_i32 : i32
    %1 = arith.extui %0 : i1 to i32
    %c0_i32_0 = arith.constant 0 : i32
    %2 = arith.cmpi ne, %1, %c0_i32_0 : i32
    scf.if %2 {
      %c0_9 = arith.constant 0 : index
      %c0_10 = arith.constant 0 : index
      %15 = vector.load %arg4[%c0_9, %c0_10] : memref<1x128xf32, #tpu.memory_space<vmem>>, vector<1x128xf32>
      %16 = vector.shape_cast %15 : vector<1x128xf32> to vector<1x128xf32>
      %17 = vector.broadcast %16 : vector<1x128xf32> to vector<2x128xf32>
      %c0_11 = arith.constant 0 : index
      %c0_12 = arith.constant 0 : index
      %18 = vector.load %arg5[%c0_11, %c0_12] : memref<2x128xf32, #tpu.memory_space<vmem>>, vector<2x128xf32>
      tpu.vector_store %arg5[%c0_11, %c0_12], %17 {strides = array<i32>} : memref<2x128xf32, #tpu.memory_space<vmem>>, vector<2x128xf32>,
    } else {
    }
    %c0 = arith.constant 0 : index
    %c0_1 = arith.constant 0 : index
    %c0_2 = arith.constant 0 : index
    %3 = vector.load %arg2[%c0, %c0_1, %c0_2] : memref<2x512x16xbf16, #tpu.memory_space<vmem>>, vector<2x512x16xbf16>
    %4 = arith.extf %3 : vector<2x512x16xbf16> to vector<2x512x16xf32>
    %cst = arith.constant dense<0.000000e+00> : vector<2x512xf32>
    %5 = vector.multi_reduction <add>, %4, %cst [2] : vector<2x512x16xf32> to vector<2x512xf32>
    %c512_i32 = arith.constant 512 : i32
    %6 = arith.muli %arg1, %c512_i32 : i32
    %7 = tpu.assume_multiple %6, 512 : i32
    %8 = arith.index_cast %7 : i32 to index
    %c0_3 = arith.constant 0 : index
    %9 = vector.load %arg3[%8, %c0_3] : memref<2048x128xbf16, #tpu.memory_space<vmem>>, vector<512x128xbf16>
    %c0_4 = arith.constant 0 : index
    %c0_5 = arith.constant 0 : index
    %10 = vector.load %arg5[%c0_4, %c0_5] : memref<2x128xf32, #tpu.memory_space<vmem>>, vector<2x128xf32>
    %11 = arith.truncf %5 : vector<2x512xf32> to vector<2x512xbf16>
    %cst_6 = arith.constant dense<0.000000e+00> : vector<2x128xf32>
    %12 = tpu.matmul %11, %9, %cst_6 {dimension_numbers = #tpu.dot_dimension_numbers<[1], [0], [0], [1], [0, 0, 1, 1], [], []>} : vector<2x512xbf16>, vector<512x128xbf16>, vector<2x128xf32> -> vector<2x128xf32>
    %13 = arith.addf %10, %12 : vector<2x128xf32>
    %c0_7 = arith.constant 0 : index
    %c0_8 = arith.constant 0 : index
    %14 = vector.load %arg5[%c0_7, %c0_8] : memref<2x128xf32, #tpu.memory_space<vmem>>, vector<2x128xf32>
    tpu.vector_store %arg5[%c0_7, %c0_8], %13 {strides = array<i32>} : memref<2x128xf32, #tpu.memory_space<vmem>>, vector<2x128xf32>,
    return
  }
  func.func @transform_0(%arg0: i32, %arg1: i32) -> (i32, i32, i32) {
    %c0_i32 = arith.constant 0 : i32
    %c0_i32_0 = arith.constant 0 : i32
    return %arg0, %arg1, %c0_i32 : i32, i32, i32
  }
  func.func @transform_1(%arg0: i32, %arg1: i32) -> (i32, i32) {
    %c0_i32 = arith.constant 0 : i32
    %c0_i32_0 = arith.constant 0 : i32
    %c0_i32_1 = arith.constant 0 : i32
    return %c0_i32, %c0_i32_0 : i32, i32
  }
  func.func @transform_2(%arg0: i32, %arg1: i32) -> (i32, i32) {
    %c0_i32 = arith.constant 0 : i32
    %c0_i32_0 = arith.constant 0 : i32
    %c0_i32_1 = arith.constant 0 : i32
    return %c0_i32, %c0_i32_0 : i32, i32
  }
  func.func @transform_3(%arg0: i32, %arg1: i32) -> (i32, i32) {
    %c0_i32 = arith.constant 0 : i32
    %c0_i32_0 = arith.constant 0 : i32
    return %arg0, %c0_i32 : i32, i32
  }
}

</mosaic_0001>

<llo_original>
// kernel: resnext_head.1
$region0: #{resnext_head.1}
  #allocation0 [shape = 'u32[]', space=smem, size = 0x4, offset = 0x4, fixed_abs, tag = 'smem constant byte address 0x4 - core index']
  #allocation1 [shape = 'u32[144,128]{1,0:T(1,128)}', space=vmem, size = 0x12000, scoped, tag = 'internal scratch']
  %s0 = inlined_call_operand.vmem [shape: bf16[2,2048,16], index: 0, kind: input, shape index: {}]
  %s1 = inlined_call_operand.vmem [shape: bf16[2048,128], index: 1, kind: input, shape index: {}]
  %s2 = inlined_call_operand.vmem [shape: f32[1,128], index: 2, kind: input, shape index: {}]
  %s3 = inlined_call_operand.hbm [shape: f32[2,128], index: 3, kind: output, shape index: {}]
  %s4 = sld [smem:[#allocation0]]
  $region90: #{resnext_head.1} parent=0
    _
  %s6 = ssub.s32 1, %s4
  %s7 = scalar_select 0, %s6, %s4
  $region1: #{resnext_head.1} parent=0
    #allocation2 [shape = 'u8[524288]{0}', space=vmem, size = 0x80000, scoped, tag = 'input window, operand 0']
    #allocation3 [shape = 'u8[1024]{0}', space=vmem, size = 0x400, scoped, tag = 'output window, operand 0, single buffered']
    #allocation4 [shape = 's32[2]{0}', space=sflag, size = 0x8, scoped, tag = 'scoped memory for resnext_head.1']
    %8 = vsyncpa [#allocation4], 0
    loop: start=0, step=1, limit=6
    $region2: #{resnext_head.1} parent=1 // loop_pre_header
      _
    $region3: #{resnext_head.1} parent=1 // loop_header
      %s10 = sphi 0, %s14
      %p11 = scmp.ge.s32.totalorder %s10, 6
      %s17 = sphi 0, %s29
      %s18 = sphi 0, %s25
      %s19 = sphi 0, %s17
      %s20 = sphi 0, %s18
      %s21 = sphi 0, %s19
      %s22 = sphi 0, %s20
      %s34 = sphi 0, %s36
      %s37 = sphi 0, %s34
      %s38 = sphi 0, %s37
      %s54 = sphi 0, %s38
      %s58 = sphi 0, %s58
      %s60 = sphi 0, %s58
      %s61 = sphi 0, %s60
      %s75 = sphi 0, %s61
      %s79 = sphi 0, %s79
      %s81 = sphi 0, %s79
      %s82 = sphi 0, %s81
      %s96 = sphi 0, %s82
      %s102 = sphi 0, %s104
      %s105 = sphi 0, %s102
      %s106 = sphi 0, %s105
      %s122 = sphi 0, %s106
    $region4: #{resnext_head.1} parent=1 // loop_header_branch
      %13 = sbr.rel (%p11) target = $region8
    $region5: #{resnext_head.1} parent=1 // loop_body
      %s15 = ssub.s32 %s10, 1
      %s16 = ssub.s32 %s10, 2
      %s23 = sadd.s32 1, %s18
      %p24 = scmp.ge.s32.totalorder %s23, 4
      %s25 = scalar_select %p24, 0, %s23
      %s26 = sadd.s32 1, %s17
      %s27 = scalar_select %p24, %s26, %s17
      %p28 = scmp.ge.s32.totalorder %s27, 1
      %s29 = scalar_select %p28, 0, %s27
      %s30 = ssub.s32 %s17, %s29
      %s31 = ssub.s32 %s18, %s25
      %s32 = sor.u32 %s30, %s31
      %p33 = scmp.eq.s32.totalorder %s32, 0
      %s35 = sadd.s32 %s34, 1
      %s36 = scalar_select %p33, %s34, %s35
      %p39 = pneg %p33
      %p40 = scmp.eq.s32.totalorder %s10, 3
      %p41 = por %p39, %p40
      %p42 = scmp.ne.s32.totalorder %s34, %s37
      %p43 = scmp.eq.s32.totalorder %s10, 0
      %p44 = por %p42, %p43
      %p45 = scmp.ne.s32.totalorder %s34, %s37
      %p46 = scmp.eq.s32.totalorder %s15, 3
      %p47 = por %p45, %p46
      %p48 = scmp.ne.s32.totalorder %s37, %s38
      %p49 = scmp.eq.s32.totalorder %s15, 0
      %p50 = por %p48, %p49
      %p51 = scmp.ne.s32.totalorder %s37, %s38
      %p52 = scmp.eq.s32.totalorder %s16, 3
      %p53 = por %p51, %p52
      %p55 = scmp.ne.s32.totalorder %s38, %s54
      %p56 = scmp.eq.s32.totalorder %s16, 0
      %p57 = por %p55, %p56
      %s59 = sadd.s32 %s58, 1
      %p62 = scmp.eq.s32.totalorder %s10, 3
      %p63 = scmp.ne.s32.totalorder %s58, %s60
      %p64 = scmp.eq.s32.totalorder %s10, 0
      %p65 = por %p63, %p64
      %p66 = scmp.ne.s32.totalorder %s58, %s60
      %p67 = scmp.eq.s32.totalorder %s15, 3
      %p68 = por %p66, %p67
      %p69 = scmp.ne.s32.totalorder %s60, %s61
      %p70 = scmp.eq.s32.totalorder %s15, 0
      %p71 = por %p69, %p70
      %p72 = scmp.ne.s32.totalorder %s60, %s61
      %p73 = scmp.eq.s32.totalorder %s16, 3
      %p74 = por %p72, %p73
      %p76 = scmp.ne.s32.totalorder %s61, %s75
      %p77 = scmp.eq.s32.totalorder %s16, 0
      %p78 = por %p76, %p77
      %s80 = sadd.s32 %s79, 1
      %p83 = scmp.eq.s32.totalorder %s10, 3
      %p84 = scmp.ne.s32.totalorder %s79, %s81
      %p85 = scmp.eq.s32.totalorder %s10, 0
      %p86 = por %p84, %p85
      %p87 = scmp.ne.s32.totalorder %s79, %s81
      %p88 = scmp.eq.s32.totalorder %s15, 3
      %p89 = por %p87, %p88
      %p90 = scmp.ne.s32.totalorder %s81, %s82
      %p91 = scmp.eq.s32.totalorder %s15, 0
      %p92 = por %p90, %p91
      %p93 = scmp.ne.s32.totalorder %s81, %s82
      %p94 = scmp.eq.s32.totalorder %s16, 3
      %p95 = por %p93, %p94
      %p97 = scmp.ne.s32.totalorder %s82, %s96
      %p98 = scmp.eq.s32.totalorder %s16, 0
      %p99 = por %p97, %p98
      %s100 = ssub.s32 %s17, %s29
      %p101 = scmp.eq.s32.totalorder %s100, 0
      %s103 = sadd.s32 %s102, 1
      %s104 = scalar_select %p101, %s102, %s103
      %p107 = pneg %p101
      %p108 = scmp.eq.s32.totalorder %s10, 3
      %p109 = por %p107, %p108
      %p110 = scmp.ne.s32.totalorder %s102, %s105
      %p111 = scmp.eq.s32.totalorder %s10, 0
      %p112 = por %p110, %p111
      %p113 = scmp.ne.s32.totalorder %s102, %s105
      %p114 = scmp.eq.s32.totalorder %s15, 3
      %p115 = por %p113, %p114
      %p116 = scmp.ne.s32.totalorder %s105, %s106
      %p117 = scmp.eq.s32.totalorder %s15, 0
      %p118 = por %p116, %p117
      %p119 = scmp.ne.s32.totalorder %s105, %s106
      %p120 = scmp.eq.s32.totalorder %s16, 3
      %p121 = por %p119, %p120
      %p123 = scmp.ne.s32.totalorder %s106, %s122
      %p124 = scmp.eq.s32.totalorder %s16, 0
      %p125 = por %p123, %p124
      %p126 = scmp.le.s32.totalorder 1, %s10
      %p127 = scmp.lt.s32.totalorder %s10, 5
      %p128 = pnand %p126, %p127
      %p129 = pneg %p128
      // Predicated region
      $region9: #{resnext_head.1} parent=5 // pred_check
        _
      $region10: #{resnext_head.1} parent=5 // pred_check_branch
        %131 = sbr.rel (%p128) target = $region12
      $region11: #{resnext_head.1} parent=5 // pred_region
        %s132 = ssub.s32 %s10, 1
        // Predicated region
        $region13: #{resnext_head.1} parent=11 // pred_check
          %p133 = pneg %p71
        $region14: #{resnext_head.1} parent=11 // pred_check_branch
          %135 = sbr.rel (%p133) target = $region16
        $region15: #{resnext_head.1} parent=11 // pred_region
          _
        $region16: #{resnext_head.1} parent=11 // pred_fallthru
          _
        // Predicated region
        $region17: #{resnext_head.1} parent=11 // pred_check
          %p136 = pneg %p92
        $region18: #{resnext_head.1} parent=11 // pred_check_branch
          %138 = sbr.rel (%p136) target = $region20
        $region19: #{resnext_head.1} parent=11 // pred_region
          _
        $region20: #{resnext_head.1} parent=11 // pred_fallthru
          _
      $region12: #{resnext_head.1} parent=5 // pred_fallthru
        _
      %p139 = scmp.lt.s32.totalorder %s10, 4
      // Predicated region
      $region21: #{resnext_head.1} parent=5 // pred_check
        %p140 = pneg %p139
      $region22: #{resnext_head.1} parent=5 // pred_check_branch
        %142 = sbr.rel (%p140) target = $region24
      $region23: #{resnext_head.1} parent=5 // pred_region
        // Predicated region
        $region25: #{resnext_head.1} parent=23 // pred_check
          %p143 = pneg %p44
        $region26: #{resnext_head.1} parent=23 // pred_check_branch
          %145 = sbr.rel (%p143) target = $region28
        $region27: #{resnext_head.1} parent=23 // pred_region
          %s146 = sand.u32 %s34, 1
          %s147 = sand.u32 %s34, 1
          %s148 = smul.addr %s147, 512
          %s149 = scalar_lea.vmem [#allocation2], %s148
          %s150 = smul.u32 2, %s17
          %s151 = smul.u32 64, %s18
          %s152 = smul.addr %s150, 256
          %s153 = sadd.s32 %s151, %s152
          %s154 = smul.addr %s153, 4
          %s155 = scalar_lea.vmem %s0, %s154
          // Predicated region
          $region29: #{resnext_head.1} parent=27 // pred_check
            _
          $region30: #{resnext_head.1} parent=27 // pred_check_branch
            %157 = sbr.rel (0) target = $region32
          $region31: #{resnext_head.1} parent=27 // pred_region
            // Predicated region
            $region33: #{resnext_head.1} parent=31 // pred_check
              _
            $region34: #{resnext_head.1} parent=31 // pred_check_branch
              %159 = sbr.rel target = $region36
            $region35: #{resnext_head.1} parent=31 // pred_region
              // Predicated region
              $region48: #{resnext_head.1} parent=35 // pred_check
                _
              $region49: #{resnext_head.1} parent=35 // pred_check_branch
                %429 = sbr.rel (0) target = $region51
              $region50: #{resnext_head.1} parent=35 // pred_region
                loop: start=0, step=1, limit=1
                $region52: #{resnext_head.1} parent=50 // loop_pre_header
                  _
                $region53: #{resnext_head.1} parent=50 // loop_header
                  %s431 = sphi 0, %s435
                  %p432 = scmp.ge.s32.totalorder %s431, 1
                  %s436 = sphi %s155, %s155
                  %s437 = sphi %s149, %s149
                $region54: #{resnext_head.1} parent=50 // loop_header_branch
                  %434 = sbr.rel (%p432) target = $region58
                $region55: #{resnext_head.1} parent=50 // loop_body
                  _
                $region56: #{resnext_head.1} parent=50 // loop_footer
                  %s435 = sadd.s32 1, %s431
                $region57: #{resnext_head.1} parent=50 // loop_footer_branch
                  %430 = sbr.rel target = $region53
                $region58: #{resnext_head.1} parent=50 // loop_exit
                  _
                %s439 = ssub.s32 16, 1
                loop: start=0, step=1, limit=1
                $region59: #{resnext_head.1} parent=50 // loop_pre_header
                  _
                $region60: #{resnext_head.1} parent=50 // loop_header
                  %s441 = sphi 0, %s445
                  %p442 = scmp.ge.s32.totalorder %s441, 1
                  %s446 = sphi %s155, %s155
                  %s447 = sphi %s149, %s149
                $region61: #{resnext_head.1} parent=50 // loop_header_branch
                  %444 = sbr.rel (%p442) target = $region65
                $region62: #{resnext_head.1} parent=50 // loop_body
                  %v448 = vld [vmem:[%s446] sm:%s439]
                  %449 = vst [vmem:[%s447] sm:%s439] %v448
                  %v450 = vld [vmem:[%s446 + $0x4] sm:%s439]
                  %451 = vst [vmem:[%s447 + $0x4] sm:%s439] %v450
                  %v452 = vld [vmem:[%s446 + $0x8] sm:%s439]
                  %453 = vst [vmem:[%s447 + $0x8] sm:%s439] %v452
                  %v454 = vld [vmem:[%s446 + $0xc] sm:%s439]
                  %455 = vst [vmem:[%s447 + $0xc] sm:%s439] %v454
                  %v456 = vld [vmem:[%s446 + $0x10] sm:%s439]
                  %457 = vst [vmem:[%s447 + $0x10] sm:%s439] %v456
                  %v458 = vld [vmem:[%s446 + $0x14] sm:%s439]
                  %459 = vst [vmem:[%s447 + $0x14] sm:%s439] %v458
                  %v460 = vld [vmem:[%s446 + $0x18] sm:%s439]
                  %461 = vst [vmem:[%s447 + $0x18] sm:%s439] %v460
                  %v462 = vld [vmem:[%s446 + $0x1c] sm:%s439]
                  %463 = vst [vmem:[%s447 + $0x1c] sm:%s439] %v462
                  %v464 = vld [vmem:[%s446 + $0x20] sm:%s439]
                  %465 = vst [vmem:[%s447 + $0x20] sm:%s439] %v464
                  %v466 = vld [vmem:[%s446 + $0x24] sm:%s439]
                  %467 = vst [vmem:[%s447 + $0x24] sm:%s439] %v466
                  %v468 = vld [vmem:[%s446 + $0x28] sm:%s439]
                  %469 = vst [vmem:[%s447 + $0x28] sm:%s439] %v468
                  %v470 = vld [vmem:[%s446 + $0x2c] sm:%s439]
                  %471 = vst [vmem:[%s447 + $0x2c] sm:%s439] %v470
                  %v472 = vld [vmem:[%s446 + $0x30] sm:%s439]
                  %473 = vst [vmem:[%s447 + $0x30] sm:%s439] %v472
                  %v474 = vld [vmem:[%s446 + $0x34] sm:%s439]
                  %475 = vst [vmem:[%s447 + $0x34] sm:%s439] %v474
                  %v476 = vld [vmem:[%s446 + $0x38] sm:%s439]
                  %477 = vst [vmem:[%s447 + $0x38] sm:%s439] %v476
                  %v478 = vld [vmem:[%s446 + $0x3c] sm:%s439]
                  %479 = vst [vmem:[%s447 + $0x3c] sm:%s439] %v478
                  %v480 = vld [vmem:[%s446 + $0x40] sm:%s439]
                  %481 = vst [vmem:[%s447 + $0x40] sm:%s439] %v480
                  %v482 = vld [vmem:[%s446 + $0x44] sm:%s439]
                  %483 = vst [vmem:[%s447 + $0x44] sm:%s439] %v482
                  %v484 = vld [vmem:[%s446 + $0x48] sm:%s439]
                  %485 = vst [vmem:[%s447 + $0x48] sm:%s439] %v484
                  %v486 = vld [vmem:[%s446 + $0x4c] sm:%s439]
                  %487 = vst [vmem:[%s447 + $0x4c] sm:%s439] %v486
                  %v488 = vld [vmem:[%s446 + $0x50] sm:%s439]
                  %489 = vst [vmem:[%s447 + $0x50] sm:%s439] %v488
                  %v490 = vld [vmem:[%s446 + $0x54] sm:%s439]
                  %491 = vst [vmem:[%s447 + $0x54] sm:%s439] %v490
                  %v492 = vld [vmem:[%s446 + $0x58] sm:%s439]
                  %493 = vst [vmem:[%s447 + $0x58] sm:%s439] %v492
                  %v494 = vld [vmem:[%s446 + $0x5c] sm:%s439]
                  %495 = vst [vmem:[%s447 + $0x5c] sm:%s439] %v494
                  %v496 = vld [vmem:[%s446 + $0x60] sm:%s439]
                  %497 = vst [vmem:[%s447 + $0x60] sm:%s439] %v496
                  %v498 = vld [vmem:[%s446 + $0x64] sm:%s439]
                  %499 = vst [vmem:[%s447 + $0x64] sm:%s439] %v498
                  %v500 = vld [vmem:[%s446 + $0x68] sm:%s439]
                  %501 = vst [vmem:[%s447 + $0x68] sm:%s439] %v500
                  %v502 = vld [vmem:[%s446 + $0x6c] sm:%s439]
                  %503 = vst [vmem:[%s447 + $0x6c] sm:%s439] %v502
                  %v504 = vld [vmem:[%s446 + $0x70] sm:%s439]
                  %505 = vst [vmem:[%s447 + $0x70] sm:%s439] %v504
                  %v506 = vld [vmem:[%s446 + $0x74] sm:%s439]
                  %507 = vst [vmem:[%s447 + $0x74] sm:%s439] %v506
                  %v508 = vld [vmem:[%s446 + $0x78] sm:%s439]
                  %509 = vst [vmem:[%s447 + $0x78] sm:%s439] %v508
                  %v510 = vld [vmem:[%s446 + $0x7c] sm:%s439]
                  %511 = vst [vmem:[%s447 + $0x7c] sm:%s439] %v510
                  %v512 = vld [vmem:[%s446 + $0x80] sm:%s439]
                  %513 = vst [vmem:[%s447 + $0x80] sm:%s439] %v512
                  %v514 = vld [vmem:[%s446 + $0x84] sm:%s439]
                  %515 = vst [vmem:[%s447 + $0x84] sm:%s439] %v514
                  %v516 = vld [vmem:[%s446 + $0x88] sm:%s439]
                  %517 = vst [vmem:[%s447 + $0x88] sm:%s439] %v516
                  %v518 = vld [vmem:[%s446 + $0x8c] sm:%s439]
                  %519 = vst [vmem:[%s447 + $0x8c] sm:%s439] %v518
                  %v520 = vld [vmem:[%s446 + $0x90] sm:%s439]
                  %521 = vst [vmem:[%s447 + $0x90] sm:%s439] %v520
                  %v522 = vld [vmem:[%s446 + $0x94] sm:%s439]
                  %523 = vst [vmem:[%s447 + $0x94] sm:%s439] %v522
                  %v524 = vld [vmem:[%s446 + $0x98] sm:%s439]
                  %525 = vst [vmem:[%s447 + $0x98] sm:%s439] %v524
                  %v526 = vld [vmem:[%s446 + $0x9c] sm:%s439]
                  %527 = vst [vmem:[%s447 + $0x9c] sm:%s439] %v526
                  %v528 = vld [vmem:[%s446 + $0xa0] sm:%s439]
                  %529 = vst [vmem:[%s447 + $0xa0] sm:%s439] %v528
                  %v530 = vld [vmem:[%s446 + $0xa4] sm:%s439]
                  %531 = vst [vmem:[%s447 + $0xa4] sm:%s439] %v530
                  %v532 = vld [vmem:[%s446 + $0xa8] sm:%s439]
                  %533 = vst [vmem:[%s447 + $0xa8] sm:%s439] %v532
                  %v534 = vld [vmem:[%s446 + $0xac] sm:%s439]
                  %535 = vst [vmem:[%s447 + $0xac] sm:%s439] %v534
                  %v536 = vld [vmem:[%s446 + $0xb0] sm:%s439]
                  %537 = vst [vmem:[%s447 + $0xb0] sm:%s439] %v536
                  %v538 = vld [vmem:[%s446 + $0xb4] sm:%s439]
                  %539 = vst [vmem:[%s447 + $0xb4] sm:%s439] %v538
                  %v540 = vld [vmem:[%s446 + $0xb8] sm:%s439]
                  %541 = vst [vmem:[%s447 + $0xb8] sm:%s439] %v540
                  %v542 = vld [vmem:[%s446 + $0xbc] sm:%s439]
                  %543 = vst [vmem:[%s447 + $0xbc] sm:%s439] %v542
                  %v544 = vld [vmem:[%s446 + $0xc0] sm:%s439]
                  %545 = vst [vmem:[%s447 + $0xc0] sm:%s439] %v544
                  %v546 = vld [vmem:[%s446 + $0xc4] sm:%s439]
                  %547 = vst [vmem:[%s447 + $0xc4] sm:%s439] %v546
                  %v548 = vld [vmem:[%s446 + $0xc8] sm:%s439]
                  %549 = vst [vmem:[%s447 + $0xc8] sm:%s439] %v548
                  %v550 = vld [vmem:[%s446 + $0xcc] sm:%s439]
                  %551 = vst [vmem:[%s447 + $0xcc] sm:%s439] %v550
                  %v552 = vld [vmem:[%s446 + $0xd0] sm:%s439]
                  %553 = vst [vmem:[%s447 + $0xd0] sm:%s439] %v552
                  %v554 = vld [vmem:[%s446 + $0xd4] sm:%s439]
                  %555 = vst [vmem:[%s447 + $0xd4] sm:%s439] %v554
                  %v556 = vld [vmem:[%s446 + $0xd8] sm:%s439]
                  %557 = vst [vmem:[%s447 + $0xd8] sm:%s439] %v556
                  %v558 = vld [vmem:[%s446 + $0xdc] sm:%s439]
                  %559 = vst [vmem:[%s447 + $0xdc] sm:%s439] %v558
                  %v560 = vld [vmem:[%s446 + $0xe0] sm:%s439]
                  %561 = vst [vmem:[%s447 + $0xe0] sm:%s439] %v560
                  %v562 = vld [vmem:[%s446 + $0xe4] sm:%s439]
                  %563 = vst [vmem:[%s447 + $0xe4] sm:%s439] %v562
                  %v564 = vld [vmem:[%s446 + $0xe8] sm:%s439]
                  %565 = vst [vmem:[%s447 + $0xe8] sm:%s439] %v564
                  %v566 = vld [vmem:[%s446 + $0xec] sm:%s439]
                  %567 = vst [vmem:[%s447 + $0xec] sm:%s439] %v566
                  %v568 = vld [vmem:[%s446 + $0xf0] sm:%s439]
                  %569 = vst [vmem:[%s447 + $0xf0] sm:%s439] %v568
                  %v570 = vld [vmem:[%s446 + $0xf4] sm:%s439]
                  %571 = vst [vmem:[%s447 + $0xf4] sm:%s439] %v570
                  %v572 = vld [vmem:[%s446 + $0xf8] sm:%s439]
                  %573 = vst [vmem:[%s447 + $0xf8] sm:%s439] %v572
                  %v574 = vld [vmem:[%s446 + $0xfc] sm:%s439]
                  %575 = vst [vmem:[%s447 + $0xfc] sm:%s439] %v574
                  %v576 = vld [vmem:[%s446 + $0x400] sm:%s439]
                  %577 = vst [vmem:[%s447 + $0x100] sm:%s439] %v576
                  %v578 = vld [vmem:[%s446 + $0x404] sm:%s439]
                  %579 = vst [vmem:[%s447 + $0x104] sm:%s439] %v578
                  %v580 = vld [vmem:[%s446 + $0x408] sm:%s439]
                  %581 = vst [vmem:[%s447 + $0x108] sm:%s439] %v580
                  %v582 = vld [vmem:[%s446 + $0x40c] sm:%s439]
                  %583 = vst [vmem:[%s447 + $0x10c] sm:%s439] %v582
                  %v584 = vld [vmem:[%s446 + $0x410] sm:%s439]
                  %585 = vst [vmem:[%s447 + $0x110] sm:%s439] %v584
                  %v586 = vld [vmem:[%s446 + $0x414] sm:%s439]
                  %587 = vst [vmem:[%s447 + $0x114] sm:%s439] %v586
                  %v588 = vld [vmem:[%s446 + $0x418] sm:%s439]
                  %589 = vst [vmem:[%s447 + $0x118] sm:%s439] %v588
                  %v590 = vld [vmem:[%s446 + $0x41c] sm:%s439]
                  %591 = vst [vmem:[%s447 + $0x11c] sm:%s439] %v590
                  %v592 = vld [vmem:[%s446 + $0x420] sm:%s439]
                  %593 = vst [vmem:[%s447 + $0x120] sm:%s439] %v592
                  %v594 = vld [vmem:[%s446 + $0x424] sm:%s439]
                  %595 = vst [vmem:[%s447 + $0x124] sm:%s439] %v594
                  %v596 = vld [vmem:[%s446 + $0x428] sm:%s439]
                  %597 = vst [vmem:[%s447 + $0x128] sm:%s439] %v596
                  %v598 = vld [vmem:[%s446 + $0x42c] sm:%s439]
                  %599 = vst [vmem:[%s447 + $0x12c] sm:%s439] %v598
                  %v600 = vld [vmem:[%s446 + $0x430] sm:%s439]
                  %601 = vst [vmem:[%s447 + $0x130] sm:%s439] %v600
                  %v602 = vld [vmem:[%s446 + $0x434] sm:%s439]
                  %603 = vst [vmem:[%s447 + $0x134] sm:%s439] %v602
                  %v604 = vld [vmem:[%s446 + $0x438] sm:%s439]
                  %605 = vst [vmem:[%s447 + $0x138] sm:%s439] %v604
                  %v606 = vld [vmem:[%s446 + $0x43c] sm:%s439]
                  %607 = vst [vmem:[%s447 + $0x13c] sm:%s439] %v606
                  %v608 = vld [vmem:[%s446 + $0x440] sm:%s439]
                  %609 = vst [vmem:[%s447 + $0x140] sm:%s439] %v608
                  %v610 = vld [vmem:[%s446 + $0x444] sm:%s439]
                  %611 = vst [vmem:[%s447 + $0x144] sm:%s439] %v610
                  %v612 = vld [vmem:[%s446 + $0x448] sm:%s439]
                  %613 = vst [vmem:[%s447 + $0x148] sm:%s439] %v612
                  %v614 = vld [vmem:[%s446 + $0x44c] sm:%s439]
                  %615 = vst [vmem:[%s447 + $0x14c] sm:%s439] %v614
                  %v616 = vld [vmem:[%s446 + $0x450] sm:%s439]
                  %617 = vst [vmem:[%s447 + $0x150] sm:%s439] %v616
                  %v618 = vld [vmem:[%s446 + $0x454] sm:%s439]
                  %619 = vst [vmem:[%s447 + $0x154] sm:%s439] %v618
                  %v620 = vld [vmem:[%s446 + $0x458] sm:%s439]
                  %621 = vst [vmem:[%s447 + $0x158] sm:%s439] %v620
                  %v622 = vld [vmem:[%s446 + $0x45c] sm:%s439]
                  %623 = vst [vmem:[%s447 + $0x15c] sm:%s439] %v622
                  %v624 = vld [vmem:[%s446 + $0x460] sm:%s439]
                  %625 = vst [vmem:[%s447 + $0x160] sm:%s439] %v624
                  %v626 = vld [vmem:[%s446 + $0x464] sm:%s439]
                  %627 = vst [vmem:[%s447 + $0x164] sm:%s439] %v626
                  %v628 = vld [vmem:[%s446 + $0x468] sm:%s439]
                  %629 = vst [vmem:[%s447 + $0x168] sm:%s439] %v628
                  %v630 = vld [vmem:[%s446 + $0x46c] sm:%s439]
                  %631 = vst [vmem:[%s447 + $0x16c] sm:%s439] %v630
                  %v632 = vld [vmem:[%s446 + $0x470] sm:%s439]
                  %633 = vst [vmem:[%s447 + $0x170] sm:%s439] %v632
                  %v634 = vld [vmem:[%s446 + $0x474] sm:%s439]
                  %635 = vst [vmem:[%s447 + $0x174] sm:%s439] %v634
                  %v636 = vld [vmem:[%s446 + $0x478] sm:%s439]
                  %637 = vst [vmem:[%s447 + $0x178] sm:%s439] %v636
                  %v638 = vld [vmem:[%s446 + $0x47c] sm:%s439]
                  %639 = vst [vmem:[%s447 + $0x17c] sm:%s439] %v638
                  %v640 = vld [vmem:[%s446 + $0x480] sm:%s439]
                  %641 = vst [vmem:[%s447 + $0x180] sm:%s439] %v640
                  %v642 = vld [vmem:[%s446 + $0x484] sm:%s439]
                  %643 = vst [vmem:[%s447 + $0x184] sm:%s439] %v642
                  %v644 = vld [vmem:[%s446 + $0x488] sm:%s439]
                  %645 = vst [vmem:[%s447 + $0x188] sm:%s439] %v644
                  %v646 = vld [vmem:[%s446 + $0x48c] sm:%s439]
                  %647 = vst [vmem:[%s447 + $0x18c] sm:%s439] %v646
                  %v648 = vld [vmem:[%s446 + $0x490] sm:%s439]
                  %649 = vst [vmem:[%s447 + $0x190] sm:%s439] %v648
                  %v650 = vld [vmem:[%s446 + $0x494] sm:%s439]
                  %651 = vst [vmem:[%s447 + $0x194] sm:%s439] %v650
                  %v652 = vld [vmem:[%s446 + $0x498] sm:%s439]
                  %653 = vst [vmem:[%s447 + $0x198] sm:%s439] %v652
                  %v654 = vld [vmem:[%s446 + $0x49c] sm:%s439]
                  %655 = vst [vmem:[%s447 + $0x19c] sm:%s439] %v654
                  %v656 = vld [vmem:[%s446 + $0x4a0] sm:%s439]
                  %657 = vst [vmem:[%s447 + $0x1a0] sm:%s439] %v656
                  %v658 = vld [vmem:[%s446 + $0x4a4] sm:%s439]
                  %659 = vst [vmem:[%s447 + $0x1a4] sm:%s439] %v658
                  %v660 = vld [vmem:[%s446 + $0x4a8] sm:%s439]
                  %661 = vst [vmem:[%s447 + $0x1a8] sm:%s439] %v660
                  %v662 = vld [vmem:[%s446 + $0x4ac] sm:%s439]
                  %663 = vst [vmem:[%s447 + $0x1ac] sm:%s439] %v662
                  %v664 = vld [vmem:[%s446 + $0x4b0] sm:%s439]
                  %665 = vst [vmem:[%s447 + $0x1b0] sm:%s439] %v664
                  %v666 = vld [vmem:[%s446 + $0x4b4] sm:%s439]
                  %667 = vst [vmem:[%s447 + $0x1b4] sm:%s439] %v666
                  %v668 = vld [vmem:[%s446 + $0x4b8] sm:%s439]
                  %669 = vst [vmem:[%s447 + $0x1b8] sm:%s439] %v668
                  %v670 = vld [vmem:[%s446 + $0x4bc] sm:%s439]
                  %671 = vst [vmem:[%s447 + $0x1bc] sm:%s439] %v670
                  %v672 = vld [vmem:[%s446 + $0x4c0] sm:%s439]
                  %673 = vst [vmem:[%s447 + $0x1c0] sm:%s439] %v672
                  %v674 = vld [vmem:[%s446 + $0x4c4] sm:%s439]
                  %675 = vst [vmem:[%s447 + $0x1c4] sm:%s439] %v674
                  %v676 = vld [vmem:[%s446 + $0x4c8] sm:%s439]
                  %677 = vst [vmem:[%s447 + $0x1c8] sm:%s439] %v676
                  %v678 = vld [vmem:[%s446 + $0x4cc] sm:%s439]
                  %679 = vst [vmem:[%s447 + $0x1cc] sm:%s439] %v678
                  %v680 = vld [vmem:[%s446 + $0x4d0] sm:%s439]
                  %681 = vst [vmem:[%s447 + $0x1d0] sm:%s439] %v680
                  %v682 = vld [vmem:[%s446 + $0x4d4] sm:%s439]
                  %683 = vst [vmem:[%s447 + $0x1d4] sm:%s439] %v682
                  %v684 = vld [vmem:[%s446 + $0x4d8] sm:%s439]
                  %685 = vst [vmem:[%s447 + $0x1d8] sm:%s439] %v684
                  %v686 = vld [vmem:[%s446 + $0x4dc] sm:%s439]
                  %687 = vst [vmem:[%s447 + $0x1dc] sm:%s439] %v686
                  %v688 = vld [vmem:[%s446 + $0x4e0] sm:%s439]
                  %689 = vst [vmem:[%s447 + $0x1e0] sm:%s439] %v688
                  %v690 = vld [vmem:[%s446 + $0x4e4] sm:%s439]
                  %691 = vst [vmem:[%s447 + $0x1e4] sm:%s439] %v690
                  %v692 = vld [vmem:[%s446 + $0x4e8] sm:%s439]
                  %693 = vst [vmem:[%s447 + $0x1e8] sm:%s439] %v692
                  %v694 = vld [vmem:[%s446 + $0x4ec] sm:%s439]
                  %695 = vst [vmem:[%s447 + $0x1ec] sm:%s439] %v694
                  %v696 = vld [vmem:[%s446 + $0x4f0] sm:%s439]
                  %697 = vst [vmem:[%s447 + $0x1f0] sm:%s439] %v696
                  %v698 = vld [vmem:[%s446 + $0x4f4] sm:%s439]
                  %699 = vst [vmem:[%s447 + $0x1f4] sm:%s439] %v698
                  %v700 = vld [vmem:[%s446 + $0x4f8] sm:%s439]
                  %701 = vst [vmem:[%s447 + $0x1f8] sm:%s439] %v700
                  %v702 = vld [vmem:[%s446 + $0x4fc] sm:%s439]
                  %703 = vst [vmem:[%s447 + $0x1fc] sm:%s439] %v702
                $region63: #{resnext_head.1} parent=50 // loop_footer
                  %s445 = sadd.s32 1, %s441
                $region64: #{resnext_head.1} parent=50 // loop_footer_branch
                  %440 = sbr.rel target = $region60
                $region65: #{resnext_head.1} parent=50 // loop_exit
                  _
              $region51: #{resnext_head.1} parent=35 // pred_fallthru
                _
            $region36: #{resnext_head.1} parent=31 // pred_fallthru
              _
            // Predicated region
            $region37: #{resnext_head.1} parent=31 // pred_check
              _
            $region38: #{resnext_head.1} parent=31 // pred_check_branch
              %161 = sbr.rel (0) target = $region40
            $region39: #{resnext_head.1} parent=31 // pred_region
              %s163 = ssub.s32 16, 1
              loop: start=0, step=1, limit=1
              $region41: #{resnext_head.1} parent=39 // loop_pre_header
                _
              $region42: #{resnext_head.1} parent=39 // loop_header
                %s165 = sphi 0, %s169
                %p166 = scmp.ge.s32.totalorder %s165, 1
                %s170 = sphi %s155, %s155
                %s171 = sphi %s149, %s149
              $region43: #{resnext_head.1} parent=39 // loop_header_branch
                %168 = sbr.rel (%p166) target = $region47
              $region44: #{resnext_head.1} parent=39 // loop_body
                %v172 = vld [vmem:[%s170] sm:%s163]
                %173 = vst [vmem:[%s171] sm:%s163] %v172
                %v174 = vld [vmem:[%s170 + $0x4] sm:%s163]
                %175 = vst [vmem:[%s171 + $0x4] sm:%s163] %v174
                %v176 = vld [vmem:[%s170 + $0x8] sm:%s163]
                %177 = vst [vmem:[%s171 + $0x8] sm:%s163] %v176
                %v178 = vld [vmem:[%s170 + $0xc] sm:%s163]
                %179 = vst [vmem:[%s171 + $0xc] sm:%s163] %v178
                %v180 = vld [vmem:[%s170 + $0x10] sm:%s163]
                %181 = vst [vmem:[%s171 + $0x10] sm:%s163] %v180
                %v182 = vld [vmem:[%s170 + $0x14] sm:%s163]
                %183 = vst [vmem:[%s171 + $0x14] sm:%s163] %v182
                %v184 = vld [vmem:[%s170 + $0x18] sm:%s163]
                %185 = vst [vmem:[%s171 + $0x18] sm:%s163] %v184
                %v186 = vld [vmem:[%s170 + $0x1c] sm:%s163]
                %187 = vst [vmem:[%s171 + $0x1c] sm:%s163] %v186
                %v188 = vld [vmem:[%s170 + $0x20] sm:%s163]
                %189 = vst [vmem:[%s171 + $0x20] sm:%s163] %v188
                %v190 = vld [vmem:[%s170 + $0x24] sm:%s163]
                %191 = vst [vmem:[%s171 + $0x24] sm:%s163] %v190
                %v192 = vld [vmem:[%s170 + $0x28] sm:%s163]
                %193 = vst [vmem:[%s171 + $0x28] sm:%s163] %v192
                %v194 = vld [vmem:[%s170 + $0x2c] sm:%s163]
                %195 = vst [vmem:[%s171 + $0x2c] sm:%s163] %v194
                %v196 = vld [vmem:[%s170 + $0x30] sm:%s163]
                %197 = vst [vmem:[%s171 + $0x30] sm:%s163] %v196
                %v198 = vld [vmem:[%s170 + $0x34] sm:%s163]
                %199 = vst [vmem:[%s171 + $0x34] sm:%s163] %v198
                %v200 = vld [vmem:[%s170 + $0x38] sm:%s163]
                %201 = vst [vmem:[%s171 + $0x38] sm:%s163] %v200
                %v202 = vld [vmem:[%s170 + $0x3c] sm:%s163]
                %203 = vst [vmem:[%s171 + $0x3c] sm:%s163] %v202
                %v204 = vld [vmem:[%s170 + $0x40] sm:%s163]
                %205 = vst [vmem:[%s171 + $0x40] sm:%s163] %v204
                %v206 = vld [vmem:[%s170 + $0x44] sm:%s163]
                %207 = vst [vmem:[%s171 + $0x44] sm:%s163] %v206
                %v208 = vld [vmem:[%s170 + $0x48] sm:%s163]
                %209 = vst [vmem:[%s171 + $0x48] sm:%s163] %v208
                %v210 = vld [vmem:[%s170 + $0x4c] sm:%s163]
                %211 = vst [vmem:[%s171 + $0x4c] sm:%s163] %v210
                %v212 = vld [vmem:[%s170 + $0x50] sm:%s163]
                %213 = vst [vmem:[%s171 + $0x50] sm:%s163] %v212
                %v214 = vld [vmem:[%s170 + $0x54] sm:%s163]
                %215 = vst [vmem:[%s171 + $0x54] sm:%s163] %v214
                %v216 = vld [vmem:[%s170 + $0x58] sm:%s163]
                %217 = vst [vmem:[%s171 + $0x58] sm:%s163] %v216
                %v218 = vld [vmem:[%s170 + $0x5c] sm:%s163]
                %219 = vst [vmem:[%s171 + $0x5c] sm:%s163] %v218
                %v220 = vld [vmem:[%s170 + $0x60] sm:%s163]
                %221 = vst [vmem:[%s171 + $0x60] sm:%s163] %v220
                %v222 = vld [vmem:[%s170 + $0x64] sm:%s163]
                %223 = vst [vmem:[%s171 + $0x64] sm:%s163] %v222
                %v224 = vld [vmem:[%s170 + $0x68] sm:%s163]
                %225 = vst [vmem:[%s171 + $0x68] sm:%s163] %v224
                %v226 = vld [vmem:[%s170 + $0x6c] sm:%s163]
                %227 = vst [vmem:[%s171 + $0x6c] sm:%s163] %v226
                %v228 = vld [vmem:[%s170 + $0x70] sm:%s163]
                %229 = vst [vmem:[%s171 + $0x70] sm:%s163] %v228
                %v230 = vld [vmem:[%s170 + $0x74] sm:%s163]
                %231 = vst [vmem:[%s171 + $0x74] sm:%s163] %v230
                %v232 = vld [vmem:[%s170 + $0x78] sm:%s163]
                %233 = vst [vmem:[%s171 + $0x78] sm:%s163] %v232
                %v234 = vld [vmem:[%s170 + $0x7c] sm:%s163]
                %235 = vst [vmem:[%s171 + $0x7c] sm:%s163] %v234
                %v236 = vld [vmem:[%s170 + $0x80] sm:%s163]
                %237 = vst [vmem:[%s171 + $0x80] sm:%s163] %v236
                %v238 = vld [vmem:[%s170 + $0x84] sm:%s163]
                %239 = vst [vmem:[%s171 + $0x84] sm:%s163] %v238
                %v240 = vld [vmem:[%s170 + $0x88] sm:%s163]
                %241 = vst [vmem:[%s171 + $0x88] sm:%s163] %v240
                %v242 = vld [vmem:[%s170 + $0x8c] sm:%s163]
                %243 = vst [vmem:[%s171 + $0x8c] sm:%s163] %v242
                %v244 = vld [vmem:[%s170 + $0x90] sm:%s163]
                %245 = vst [vmem:[%s171 + $0x90] sm:%s163] %v244
                %v246 = vld [vmem:[%s170 + $0x94] sm:%s163]
                %247 = vst [vmem:[%s171 + $0x94] sm:%s163] %v246
                %v248 = vld [vmem:[%s170 + $0x98] sm:%s163]
                %249 = vst [vmem:[%s171 + $0x98] sm:%s163] %v248
                %v250 = vld [vmem:[%s170 + $0x9c] sm:%s163]
                %251 = vst [vmem:[%s171 + $0x9c] sm:%s163] %v250
                %v252 = vld [vmem:[%s170 + $0xa0] sm:%s163]
                %253 = vst [vmem:[%s171 + $0xa0] sm:%s163] %v252
                %v254 = vld [vmem:[%s170 + $0xa4] sm:%s163]
                %255 = vst [vmem:[%s171 + $0xa4] sm:%s163] %v254
                %v256 = vld [vmem:[%s170 + $0xa8] sm:%s163]
                %257 = vst [vmem:[%s171 + $0xa8] sm:%s163] %v256
                %v258 = vld [vmem:[%s170 + $0xac] sm:%s163]
                %259 = vst [vmem:[%s171 + $0xac] sm:%s163] %v258
                %v260 = vld [vmem:[%s170 + $0xb0] sm:%s163]
                %261 = vst [vmem:[%s171 + $0xb0] sm:%s163] %v260
                %v262 = vld [vmem:[%s170 + $0xb4] sm:%s163]
                %263 = vst [vmem:[%s171 + $0xb4] sm:%s163] %v262
                %v264 = vld [vmem:[%s170 + $0xb8] sm:%s163]
                %265 = vst [vmem:[%s171 + $0xb8] sm:%s163] %v264
                %v266 = vld [vmem:[%s170 + $0xbc] sm:%s163]
                %267 = vst [vmem:[%s171 + $0xbc] sm:%s163] %v266
                %v268 = vld [vmem:[%s170 + $0xc0] sm:%s163]
                %269 = vst [vmem:[%s171 + $0xc0] sm:%s163] %v268
                %v270 = vld [vmem:[%s170 + $0xc4] sm:%s163]
                %271 = vst [vmem:[%s171 + $0xc4] sm:%s163] %v270
                %v272 = vld [vmem:[%s170 + $0xc8] sm:%s163]
                %273 = vst [vmem:[%s171 + $0xc8] sm:%s163] %v272
                %v274 = vld [vmem:[%s170 + $0xcc] sm:%s163]
                %275 = vst [vmem:[%s171 + $0xcc] sm:%s163] %v274
                %v276 = vld [vmem:[%s170 + $0xd0] sm:%s163]
                %277 = vst [vmem:[%s171 + $0xd0] sm:%s163] %v276
                %v278 = vld [vmem:[%s170 + $0xd4] sm:%s163]
                %279 = vst [vmem:[%s171 + $0xd4] sm:%s163] %v278
                %v280 = vld [vmem:[%s170 + $0xd8] sm:%s163]
                %281 = vst [vmem:[%s171 + $0xd8] sm:%s163] %v280
                %v282 = vld [vmem:[%s170 + $0xdc] sm:%s163]
                %283 = vst [vmem:[%s171 + $0xdc] sm:%s163] %v282
                %v284 = vld [vmem:[%s170 + $0xe0] sm:%s163]
                %285 = vst [vmem:[%s171 + $0xe0] sm:%s163] %v284
                %v286 = vld [vmem:[%s170 + $0xe4] sm:%s163]
                %287 = vst [vmem:[%s171 + $0xe4] sm:%s163] %v286
                %v288 = vld [vmem:[%s170 + $0xe8] sm:%s163]
                %289 = vst [vmem:[%s171 + $0xe8] sm:%s163] %v288
                %v290 = vld [vmem:[%s170 + $0xec] sm:%s163]
                %291 = vst [vmem:[%s171 + $0xec] sm:%s163] %v290
                %v292 = vld [vmem:[%s170 + $0xf0] sm:%s163]
                %293 = vst [vmem:[%s171 + $0xf0] sm:%s163] %v292
                %v294 = vld [vmem:[%s170 + $0xf4] sm:%s163]
                %295 = vst [vmem:[%s171 + $0xf4] sm:%s163] %v294
                %v296 = vld [vmem:[%s170 + $0xf8] sm:%s163]
                %297 = vst [vmem:[%s171 + $0xf8] sm:%s163] %v296
                %v298 = vld [vmem:[%s170 + $0xfc] sm:%s163]
                %299 = vst [vmem:[%s171 + $0xfc] sm:%s163] %v298
                %v300 = vld [vmem:[%s170 + $0x400] sm:%s163]
                %301 = vst [vmem:[%s171 + $0x100] sm:%s163] %v300
                %v302 = vld [vmem:[%s170 + $0x404] sm:%s163]
                %303 = vst [vmem:[%s171 + $0x104] sm:%s163] %v302
                %v304 = vld [vmem:[%s170 + $0x408] sm:%s163]
                %305 = vst [vmem:[%s171 + $0x108] sm:%s163] %v304
                %v306 = vld [vmem:[%s170 + $0x40c] sm:%s163]
                %307 = vst [vmem:[%s171 + $0x10c] sm:%s163] %v306
                %v308 = vld [vmem:[%s170 + $0x410] sm:%s163]
                %309 = vst [vmem:[%s171 + $0x110] sm:%s163] %v308
                %v310 = vld [vmem:[%s170 + $0x414] sm:%s163]
                %311 = vst [vmem:[%s171 + $0x114] sm:%s163] %v310
                %v312 = vld [vmem:[%s170 + $0x418] sm:%s163]
                %313 = vst [vmem:[%s171 + $0x118] sm:%s163] %v312
                %v314 = vld [vmem:[%s170 + $0x41c] sm:%s163]
                %315 = vst [vmem:[%s171 + $0x11c] sm:%s163] %v314
                %v316 = vld [vmem:[%s170 + $0x420] sm:%s163]
                %317 = vst [vmem:[%s171 + $0x120] sm:%s163] %v316
                %v318 = vld [vmem:[%s170 + $0x424] sm:%s163]
                %319 = vst [vmem:[%s171 + $0x124] sm:%s163] %v318
                %v320 = vld [vmem:[%s170 + $0x428] sm:%s163]
                %321 = vst [vmem:[%s171 + $0x128] sm:%s163] %v320
                %v322 = vld [vmem:[%s170 + $0x42c] sm:%s163]
                %323 = vst [vmem:[%s171 + $0x12c] sm:%s163] %v322
                %v324 = vld [vmem:[%s170 + $0x430] sm:%s163]
                %325 = vst [vmem:[%s171 + $0x130] sm:%s163] %v324
                %v326 = vld [vmem:[%s170 + $0x434] sm:%s163]
                %327 = vst [vmem:[%s171 + $0x134] sm:%s163] %v326
                %v328 = vld [vmem:[%s170 + $0x438] sm:%s163]
                %329 = vst [vmem:[%s171 + $0x138] sm:%s163] %v328
                %v330 = vld [vmem:[%s170 + $0x43c] sm:%s163]
                %331 = vst [vmem:[%s171 + $0x13c] sm:%s163] %v330
                %v332 = vld [vmem:[%s170 + $0x440] sm:%s163]
                %333 = vst [vmem:[%s171 + $0x140] sm:%s163] %v332
                %v334 = vld [vmem:[%s170 + $0x444] sm:%s163]
                %335 = vst [vmem:[%s171 + $0x144] sm:%s163] %v334
                %v336 = vld [vmem:[%s170 + $0x448] sm:%s163]
                %337 = vst [vmem:[%s171 + $0x148] sm:%s163] %v336
                %v338 = vld [vmem:[%s170 + $0x44c] sm:%s163]
                %339 = vst [vmem:[%s171 + $0x14c] sm:%s163] %v338
                %v340 = vld [vmem:[%s170 + $0x450] sm:%s163]
                %341 = vst [vmem:[%s171 + $0x150] sm:%s163] %v340
                %v342 = vld [vmem:[%s170 + $0x454] sm:%s163]
                %343 = vst [vmem:[%s171 + $0x154] sm:%s163] %v342
                %v344 = vld [vmem:[%s170 + $0x458] sm:%s163]
                %345 = vst [vmem:[%s171 + $0x158] sm:%s163] %v344
                %v346 = vld [vmem:[%s170 + $0x45c] sm:%s163]
                %347 = vst [vmem:[%s171 + $0x15c] sm:%s163] %v346
                %v348 = vld [vmem:[%s170 + $0x460] sm:%s163]
                %349 = vst [vmem:[%s171 + $0x160] sm:%s163] %v348
                %v350 = vld [vmem:[%s170 + $0x464] sm:%s163]
                %351 = vst [vmem:[%s171 + $0x164] sm:%s163] %v350
                %v352 = vld [vmem:[%s170 + $0x468] sm:%s163]
                %353 = vst [vmem:[%s171 + $0x168] sm:%s163] %v352
                %v354 = vld [vmem:[%s170 + $0x46c] sm:%s163]
                %355 = vst [vmem:[%s171 + $0x16c] sm:%s163] %v354
                %v356 = vld [vmem:[%s170 + $0x470] sm:%s163]
                %357 = vst [vmem:[%s171 + $0x170] sm:%s163] %v356
                %v358 = vld [vmem:[%s170 + $0x474] sm:%s163]
                %359 = vst [vmem:[%s171 + $0x174] sm:%s163] %v358
                %v360 = vld [vmem:[%s170 + $0x478] sm:%s163]
                %361 = vst [vmem:[%s171 + $0x178] sm:%s163] %v360
                %v362 = vld [vmem:[%s170 + $0x47c] sm:%s163]
                %363 = vst [vmem:[%s171 + $0x17c] sm:%s163] %v362
                %v364 = vld [vmem:[%s170 + $0x480] sm:%s163]
                %365 = vst [vmem:[%s171 + $0x180] sm:%s163] %v364
                %v366 = vld [vmem:[%s170 + $0x484] sm:%s163]
                %367 = vst [vmem:[%s171 + $0x184] sm:%s163] %v366
                %v368 = vld [vmem:[%s170 + $0x488] sm:%s163]
                %369 = vst [vmem:[%s171 + $0x188] sm:%s163] %v368
                %v370 = vld [vmem:[%s170 + $0x48c] sm:%s163]
                %371 = vst [vmem:[%s171 + $0x18c] sm:%s163] %v370
                %v372 = vld [vmem:[%s170 + $0x490] sm:%s163]
                %373 = vst [vmem:[%s171 + $0x190] sm:%s163] %v372
                %v374 = vld [vmem:[%s170 + $0x494] sm:%s163]
                %375 = vst [vmem:[%s171 + $0x194] sm:%s163] %v374
                %v376 = vld [vmem:[%s170 + $0x498] sm:%s163]
                %377 = vst [vmem:[%s171 + $0x198] sm:%s163] %v376
                %v378 = vld [vmem:[%s170 + $0x49c] sm:%s163]
                %379 = vst [vmem:[%s171 + $0x19c] sm:%s163] %v378
                %v380 = vld [vmem:[%s170 + $0x4a0] sm:%s163]
                %381 = vst [vmem:[%s171 + $0x1a0] sm:%s163] %v380
                %v382 = vld [vmem:[%s170 + $0x4a4] sm:%s163]
                %383 = vst [vmem:[%s171 + $0x1a4] sm:%s163] %v382
                %v384 = vld [vmem:[%s170 + $0x4a8] sm:%s163]
                %385 = vst [vmem:[%s171 + $0x1a8] sm:%s163] %v384
                %v386 = vld [vmem:[%s170 + $0x4ac] sm:%s163]
                %387 = vst [vmem:[%s171 + $0x1ac] sm:%s163] %v386
                %v388 = vld [vmem:[%s170 + $0x4b0] sm:%s163]
                %389 = vst [vmem:[%s171 + $0x1b0] sm:%s163] %v388
                %v390 = vld [vmem:[%s170 + $0x4b4] sm:%s163]
                %391 = vst [vmem:[%s171 + $0x1b4] sm:%s163] %v390
                %v392 = vld [vmem:[%s170 + $0x4b8] sm:%s163]
                %393 = vst [vmem:[%s171 + $0x1b8] sm:%s163] %v392
                %v394 = vld [vmem:[%s170 + $0x4bc] sm:%s163]
                %395 = vst [vmem:[%s171 + $0x1bc] sm:%s163] %v394
                %v396 = vld [vmem:[%s170 + $0x4c0] sm:%s163]
                %397 = vst [vmem:[%s171 + $0x1c0] sm:%s163] %v396
                %v398 = vld [vmem:[%s170 + $0x4c4] sm:%s163]
                %399 = vst [vmem:[%s171 + $0x1c4] sm:%s163] %v398
                %v400 = vld [vmem:[%s170 + $0x4c8] sm:%s163]
                %401 = vst [vmem:[%s171 + $0x1c8] sm:%s163] %v400
                %v402 = vld [vmem:[%s170 + $0x4cc] sm:%s163]
                %403 = vst [vmem:[%s171 + $0x1cc] sm:%s163] %v402
                %v404 = vld [vmem:[%s170 + $0x4d0] sm:%s163]
                %405 = vst [vmem:[%s171 + $0x1d0] sm:%s163] %v404
                %v406 = vld [vmem:[%s170 + $0x4d4] sm:%s163]
                %407 = vst [vmem:[%s171 + $0x1d4] sm:%s163] %v406
                %v408 = vld [vmem:[%s170 + $0x4d8] sm:%s163]
                %409 = vst [vmem:[%s171 + $0x1d8] sm:%s163] %v408
                %v410 = vld [vmem:[%s170 + $0x4dc] sm:%s163]
                %411 = vst [vmem:[%s171 + $0x1dc] sm:%s163] %v410
                %v412 = vld [vmem:[%s170 + $0x4e0] sm:%s163]
                %413 = vst [vmem:[%s171 + $0x1e0] sm:%s163] %v412
                %v414 = vld [vmem:[%s170 + $0x4e4] sm:%s163]
                %415 = vst [vmem:[%s171 + $0x1e4] sm:%s163] %v414
                %v416 = vld [vmem:[%s170 + $0x4e8] sm:%s163]
                %417 = vst [vmem:[%s171 + $0x1e8] sm:%s163] %v416
                %v418 = vld [vmem:[%s170 + $0x4ec] sm:%s163]
                %419 = vst [vmem:[%s171 + $0x1ec] sm:%s163] %v418
                %v420 = vld [vmem:[%s170 + $0x4f0] sm:%s163]
                %421 = vst [vmem:[%s171 + $0x1f0] sm:%s163] %v420
                %v422 = vld [vmem:[%s170 + $0x4f4] sm:%s163]
                %423 = vst [vmem:[%s171 + $0x1f4] sm:%s163] %v422
                %v424 = vld [vmem:[%s170 + $0x4f8] sm:%s163]
                %425 = vst [vmem:[%s171 + $0x1f8] sm:%s163] %v424
                %v426 = vld [vmem:[%s170 + $0x4fc] sm:%s163]
                %427 = vst [vmem:[%s171 + $0x1fc] sm:%s163] %v426
              $region45: #{resnext_head.1} parent=39 // loop_footer
                %s169 = sadd.s32 1, %s165
              $region46: #{resnext_head.1} parent=39 // loop_footer_branch
                %164 = sbr.rel target = $region42
              $region47: #{resnext_head.1} parent=39 // loop_exit
                _
            $region40: #{resnext_head.1} parent=31 // pred_fallthru
              _
          $region32: #{resnext_head.1} parent=27 // pred_fallthru
            _
          %704 = vnop
        $region28: #{resnext_head.1} parent=23 // pred_fallthru
          _
      $region24: #{resnext_head.1} parent=5 // pred_fallthru
        _
      %p705 = scmp.le.s32.totalorder 1, %s10
      %p706 = scmp.lt.s32.totalorder %s10, 5
      %p707 = pnand %p705, %p706
      %p708 = pneg %p707
      // Predicated region
      $region66: #{resnext_head.1} parent=5 // pred_check
        _
      $region67: #{resnext_head.1} parent=5 // pred_check_branch
        %710 = sbr.rel (%p707) target = $region69
      $region68: #{resnext_head.1} parent=5 // pred_region
        %s711 = ssub.s32 %s10, 1
        %s712 = sand.u32 %s37, 1
        %s713 = sand.u32 %s37, 1
        %s714 = smul.addr %s713, 512
        %s715 = scalar_lea.vmem [#allocation2], %s714
        // Predicated region
        $region70: #{resnext_head.1} parent=68 // pred_check
          %p716 = pneg %p50
        $region71: #{resnext_head.1} parent=68 // pred_check_branch
          %718 = sbr.rel (%p716) target = $region73
        $region72: #{resnext_head.1} parent=68 // pred_region
          _
        $region73: #{resnext_head.1} parent=68 // pred_fallthru
          _
        %s719 = sand.u32 %s37, 1
        %s720 = sand.u32 %s37, 1
        %s721 = smul.addr %s720, 512
        %s722 = scalar_lea.vmem [#allocation2], %s721
        %p723 = pneg %p50
        %p724 = pneg %p47
        %p725 = pneg %p71
        %p726 = pneg %p68
        %p727 = pneg %p92
        %p728 = pneg %p89
        %p729 = pneg %p118
        %p730 = pneg %p115
        %s731 = smul.u32 2, %s19
        %s732 = smul.u32 64, %s20
        %p734 = scmp.eq.s32.totalorder %s20, 0
        // Predicated region
        $region74: #{resnext_head.1} parent=68 // pred_check
          %p735 = pneg %p734
        $region75: #{resnext_head.1} parent=68 // pred_check_branch
          %737 = sbr.rel (%p735) target = $region77
        $region76: #{resnext_head.1} parent=68 // pred_region
          %v738 = vld [vmem:[%s2] sm:$0x1]
          %v740 = vlaneseq
          %v741 = vshrl.u32 %v740, 7
          %v742 = vsub.s32 0, %v741
          %v743 = vrot.slane %v738, %v742
          %745 = vst [vmem:[#allocation3] sm:$0x3] %v743
        $region77: #{resnext_head.1} parent=68 // pred_fallthru
          _
        %v746 = vld [vmem:[%s715] sm:$0xf]
        %v747 = vld [vmem:[%s715 + $0x4] sm:$0xf]
        %v748 = vld [vmem:[%s715 + $0x8] sm:$0xf]
        %v749 = vld [vmem:[%s715 + $0xc] sm:$0xf]
        %v750 = vld [vmem:[%s715 + $0x10] sm:$0xf]
        %v751 = vld [vmem:[%s715 + $0x14] sm:$0xf]
        %v752 = vld [vmem:[%s715 + $0x18] sm:$0xf]
        %v753 = vld [vmem:[%s715 + $0x1c] sm:$0xf]
        %v754 = vld [vmem:[%s715 + $0x20] sm:$0xf]
        %v755 = vld [vmem:[%s715 + $0x24] sm:$0xf]
        %v756 = vld [vmem:[%s715 + $0x28] sm:$0xf]
        %v757 = vld [vmem:[%s715 + $0x2c] sm:$0xf]
        %v758 = vld [vmem:[%s715 + $0x30] sm:$0xf]
        %v759 = vld [vmem:[%s715 + $0x34] sm:$0xf]
        %v760 = vld [vmem:[%s715 + $0x38] sm:$0xf]
        %v761 = vld [vmem:[%s715 + $0x3c] sm:$0xf]
        %v762 = vld [vmem:[%s715 + $0x40] sm:$0xf]
        %v763 = vld [vmem:[%s715 + $0x44] sm:$0xf]
        %v764 = vld [vmem:[%s715 + $0x48] sm:$0xf]
        %v765 = vld [vmem:[%s715 + $0x4c] sm:$0xf]
        %v766 = vld [vmem:[%s715 + $0x50] sm:$0xf]
        %v767 = vld [vmem:[%s715 + $0x54] sm:$0xf]
        %v768 = vld [vmem:[%s715 + $0x58] sm:$0xf]
        %v769 = vld [vmem:[%s715 + $0x5c] sm:$0xf]
        %v770 = vld [vmem:[%s715 + $0x60] sm:$0xf]
        %v771 = vld [vmem:[%s715 + $0x64] sm:$0xf]
        %v772 = vld [vmem:[%s715 + $0x68] sm:$0xf]
        %v773 = vld [vmem:[%s715 + $0x6c] sm:$0xf]
        %v774 = vld [vmem:[%s715 + $0x70] sm:$0xf]
        %v775 = vld [vmem:[%s715 + $0x74] sm:$0xf]
        %v776 = vld [vmem:[%s715 + $0x78] sm:$0xf]
        %v777 = vld [vmem:[%s715 + $0x7c] sm:$0xf]
        %v778 = vld [vmem:[%s715 + $0x80] sm:$0xf]
        %v779 = vld [vmem:[%s715 + $0x84] sm:$0xf]
        %v780 = vld [vmem:[%s715 + $0x88] sm:$0xf]
        %v781 = vld [vmem:[%s715 + $0x8c] sm:$0xf]
        %v782 = vld [vmem:[%s715 + $0x90] sm:$0xf]
        %v783 = vld [vmem:[%s715 + $0x94] sm:$0xf]
        %v784 = vld [vmem:[%s715 + $0x98] sm:$0xf]
        %v785 = vld [vmem:[%s715 + $0x9c] sm:$0xf]
        %v786 = vld [vmem:[%s715 + $0xa0] sm:$0xf]
        %v787 = vld [vmem:[%s715 + $0xa4] sm:$0xf]
        %v788 = vld [vmem:[%s715 + $0xa8] sm:$0xf]
        %v789 = vld [vmem:[%s715 + $0xac] sm:$0xf]
        %v790 = vld [vmem:[%s715 + $0xb0] sm:$0xf]
        %v791 = vld [vmem:[%s715 + $0xb4] sm:$0xf]
        %v792 = vld [vmem:[%s715 + $0xb8] sm:$0xf]
        %v793 = vld [vmem:[%s715 + $0xbc] sm:$0xf]
        %v794 = vld [vmem:[%s715 + $0xc0] sm:$0xf]
        %v795 = vld [vmem:[%s715 + $0xc4] sm:$0xf]
        %v796 = vld [vmem:[%s715 + $0xc8] sm:$0xf]
        %v797 = vld [vmem:[%s715 + $0xcc] sm:$0xf]
        %v798 = vld [vmem:[%s715 + $0xd0] sm:$0xf]
        %v799 = vld [vmem:[%s715 + $0xd4] sm:$0xf]
        %v800 = vld [vmem:[%s715 + $0xd8] sm:$0xf]
        %v801 = vld [vmem:[%s715 + $0xdc] sm:$0xf]
        %v802 = vld [vmem:[%s715 + $0xe0] sm:$0xf]
        %v803 = vld [vmem:[%s715 + $0xe4] sm:$0xf]
        %v804 = vld [vmem:[%s715 + $0xe8] sm:$0xf]
        %v805 = vld [vmem:[%s715 + $0xec] sm:$0xf]
        %v806 = vld [vmem:[%s715 + $0xf0] sm:$0xf]
        %v807 = vld [vmem:[%s715 + $0xf4] sm:$0xf]
        %v808 = vld [vmem:[%s715 + $0xf8] sm:$0xf]
        %v809 = vld [vmem:[%s715 + $0xfc] sm:$0xf]
        %v810 = vld [vmem:[%s715 + $0x100] sm:$0xf]
        %v811 = vld [vmem:[%s715 + $0x104] sm:$0xf]
        %v812 = vld [vmem:[%s715 + $0x108] sm:$0xf]
        %v813 = vld [vmem:[%s715 + $0x10c] sm:$0xf]
        %v814 = vld [vmem:[%s715 + $0x110] sm:$0xf]
        %v815 = vld [vmem:[%s715 + $0x114] sm:$0xf]
        %v816 = vld [vmem:[%s715 + $0x118] sm:$0xf]
        %v817 = vld [vmem:[%s715 + $0x11c] sm:$0xf]
        %v818 = vld [vmem:[%s715 + $0x120] sm:$0xf]
        %v819 = vld [vmem:[%s715 + $0x124] sm:$0xf]
        %v820 = vld [vmem:[%s715 + $0x128] sm:$0xf]
        %v821 = vld [vmem:[%s715 + $0x12c] sm:$0xf]
        %v822 = vld [vmem:[%s715 + $0x130] sm:$0xf]
        %v823 = vld [vmem:[%s715 + $0x134] sm:$0xf]
        %v824 = vld [vmem:[%s715 + $0x138] sm:$0xf]
        %v825 = vld [vmem:[%s715 + $0x13c] sm:$0xf]
        %v826 = vld [vmem:[%s715 + $0x140] sm:$0xf]
        %v827 = vld [vmem:[%s715 + $0x144] sm:$0xf]
        %v828 = vld [vmem:[%s715 + $0x148] sm:$0xf]
        %v829 = vld [vmem:[%s715 + $0x14c] sm:$0xf]
        %v830 = vld [vmem:[%s715 + $0x150] sm:$0xf]
        %v831 = vld [vmem:[%s715 + $0x154] sm:$0xf]
        %v832 = vld [vmem:[%s715 + $0x158] sm:$0xf]
        %v833 = vld [vmem:[%s715 + $0x15c] sm:$0xf]
        %v834 = vld [vmem:[%s715 + $0x160] sm:$0xf]
        %v835 = vld [vmem:[%s715 + $0x164] sm:$0xf]
        %v836 = vld [vmem:[%s715 + $0x168] sm:$0xf]
        %v837 = vld [vmem:[%s715 + $0x16c] sm:$0xf]
        %v838 = vld [vmem:[%s715 + $0x170] sm:$0xf]
        %v839 = vld [vmem:[%s715 + $0x174] sm:$0xf]
        %v840 = vld [vmem:[%s715 + $0x178] sm:$0xf]
        %v841 = vld [vmem:[%s715 + $0x17c] sm:$0xf]
        %v842 = vld [vmem:[%s715 + $0x180] sm:$0xf]
        %v843 = vld [vmem:[%s715 + $0x184] sm:$0xf]
        %v844 = vld [vmem:[%s715 + $0x188] sm:$0xf]
        %v845 = vld [vmem:[%s715 + $0x18c] sm:$0xf]
        %v846 = vld [vmem:[%s715 + $0x190] sm:$0xf]
        %v847 = vld [vmem:[%s715 + $0x194] sm:$0xf]
        %v848 = vld [vmem:[%s715 + $0x198] sm:$0xf]
        %v849 = vld [vmem:[%s715 + $0x19c] sm:$0xf]
        %v850 = vld [vmem:[%s715 + $0x1a0] sm:$0xf]
        %v851 = vld [vmem:[%s715 + $0x1a4] sm:$0xf]
        %v852 = vld [vmem:[%s715 + $0x1a8] sm:$0xf]
        %v853 = vld [vmem:[%s715 + $0x1ac] sm:$0xf]
        %v854 = vld [vmem:[%s715 + $0x1b0] sm:$0xf]
        %v855 = vld [vmem:[%s715 + $0x1b4] sm:$0xf]
        %v856 = vld [vmem:[%s715 + $0x1b8] sm:$0xf]
        %v857 = vld [vmem:[%s715 + $0x1bc] sm:$0xf]
        %v858 = vld [vmem:[%s715 + $0x1c0] sm:$0xf]
        %v859 = vld [vmem:[%s715 + $0x1c4] sm:$0xf]
        %v860 = vld [vmem:[%s715 + $0x1c8] sm:$0xf]
        %v861 = vld [vmem:[%s715 + $0x1cc] sm:$0xf]
        %v862 = vld [vmem:[%s715 + $0x1d0] sm:$0xf]
        %v863 = vld [vmem:[%s715 + $0x1d4] sm:$0xf]
        %v864 = vld [vmem:[%s715 + $0x1d8] sm:$0xf]
        %v865 = vld [vmem:[%s715 + $0x1dc] sm:$0xf]
        %v866 = vld [vmem:[%s715 + $0x1e0] sm:$0xf]
        %v867 = vld [vmem:[%s715 + $0x1e4] sm:$0xf]
        %v868 = vld [vmem:[%s715 + $0x1e8] sm:$0xf]
        %v869 = vld [vmem:[%s715 + $0x1ec] sm:$0xf]
        %v870 = vld [vmem:[%s715 + $0x1f0] sm:$0xf]
        %v871 = vld [vmem:[%s715 + $0x1f4] sm:$0xf]
        %v872 = vld [vmem:[%s715 + $0x1f8] sm:$0xf]
        %v873 = vld [vmem:[%s715 + $0x1fc] sm:$0xf]
        %v874 = vunpack.c.l.bf16 %v746
        %v875 = vunpack.c.l.bf16 %v747
        %v876 = vunpack.c.l.bf16 %v748
        %v877 = vunpack.c.l.bf16 %v749
        %v878 = vunpack.c.l.bf16 %v750
        %v879 = vunpack.c.l.bf16 %v751
        %v880 = vunpack.c.l.bf16 %v752
        %v881 = vunpack.c.l.bf16 %v753
        %v882 = vunpack.c.l.bf16 %v754
        %v883 = vunpack.c.l.bf16 %v755
        %v884 = vunpack.c.l.bf16 %v756
        %v885 = vunpack.c.l.bf16 %v757
        %v886 = vunpack.c.l.bf16 %v758
        %v887 = vunpack.c.l.bf16 %v759
        %v888 = vunpack.c.l.bf16 %v760
        %v889 = vunpack.c.l.bf16 %v761
        %v890 = vunpack.c.l.bf16 %v762
        %v891 = vunpack.c.l.bf16 %v763
        %v892 = vunpack.c.l.bf16 %v764
        %v893 = vunpack.c.l.bf16 %v765
        %v894 = vunpack.c.l.bf16 %v766
        %v895 = vunpack.c.l.bf16 %v767
        %v896 = vunpack.c.l.bf16 %v768
        %v897 = vunpack.c.l.bf16 %v769
        %v898 = vunpack.c.l.bf16 %v770
        %v899 = vunpack.c.l.bf16 %v771
        %v900 = vunpack.c.l.bf16 %v772
        %v901 = vunpack.c.l.bf16 %v773
        %v902 = vunpack.c.l.bf16 %v774
        %v903 = vunpack.c.l.bf16 %v775
        %v904 = vunpack.c.l.bf16 %v776
        %v905 = vunpack.c.l.bf16 %v777
        %v906 = vunpack.c.l.bf16 %v778
        %v907 = vunpack.c.l.bf16 %v779
        %v908 = vunpack.c.l.bf16 %v780
        %v909 = vunpack.c.l.bf16 %v781
        %v910 = vunpack.c.l.bf16 %v782
        %v911 = vunpack.c.l.bf16 %v783
        %v912 = vunpack.c.l.bf16 %v784
        %v913 = vunpack.c.l.bf16 %v785
        %v914 = vunpack.c.l.bf16 %v786
        %v915 = vunpack.c.l.bf16 %v787
        %v916 = vunpack.c.l.bf16 %v788
        %v917 = vunpack.c.l.bf16 %v789
        %v918 = vunpack.c.l.bf16 %v790
        %v919 = vunpack.c.l.bf16 %v791
        %v920 = vunpack.c.l.bf16 %v792
        %v921 = vunpack.c.l.bf16 %v793
        %v922 = vunpack.c.l.bf16 %v794
        %v923 = vunpack.c.l.bf16 %v795
        %v924 = vunpack.c.l.bf16 %v796
        %v925 = vunpack.c.l.bf16 %v797
        %v926 = vunpack.c.l.bf16 %v798
        %v927 = vunpack.c.l.bf16 %v799
        %v928 = vunpack.c.l.bf16 %v800
        %v929 = vunpack.c.l.bf16 %v801
        %v930 = vunpack.c.l.bf16 %v802
        %v931 = vunpack.c.l.bf16 %v803
        %v932 = vunpack.c.l.bf16 %v804
        %v933 = vunpack.c.l.bf16 %v805
        %v934 = vunpack.c.l.bf16 %v806
        %v935 = vunpack.c.l.bf16 %v807
        %v936 = vunpack.c.l.bf16 %v808
        %v937 = vunpack.c.l.bf16 %v809
        %v938 = vunpack.c.l.bf16 %v810
        %v939 = vunpack.c.l.bf16 %v811
        %v940 = vunpack.c.l.bf16 %v812
        %v941 = vunpack.c.l.bf16 %v813
        %v942 = vunpack.c.l.bf16 %v814
        %v943 = vunpack.c.l.bf16 %v815
        %v944 = vunpack.c.l.bf16 %v816
        %v945 = vunpack.c.l.bf16 %v817
        %v946 = vunpack.c.l.bf16 %v818
        %v947 = vunpack.c.l.bf16 %v819
        %v948 = vunpack.c.l.bf16 %v820
        %v949 = vunpack.c.l.bf16 %v821
        %v950 = vunpack.c.l.bf16 %v822
        %v951 = vunpack.c.l.bf16 %v823
        %v952 = vunpack.c.l.bf16 %v824
        %v953 = vunpack.c.l.bf16 %v825
        %v954 = vunpack.c.l.bf16 %v826
        %v955 = vunpack.c.l.bf16 %v827
        %v956 = vunpack.c.l.bf16 %v828
        %v957 = vunpack.c.l.bf16 %v829
        %v958 = vunpack.c.l.bf16 %v830
        %v959 = vunpack.c.l.bf16 %v831
        %v960 = vunpack.c.l.bf16 %v832
        %v961 = vunpack.c.l.bf16 %v833
        %v962 = vunpack.c.l.bf16 %v834
        %v963 = vunpack.c.l.bf16 %v835
        %v964 = vunpack.c.l.bf16 %v836
        %v965 = vunpack.c.l.bf16 %v837
        %v966 = vunpack.c.l.bf16 %v838
        %v967 = vunpack.c.l.bf16 %v839
        %v968 = vunpack.c.l.bf16 %v840
        %v969 = vunpack.c.l.bf16 %v841
        %v970 = vunpack.c.l.bf16 %v842
        %v971 = vunpack.c.l.bf16 %v843
        %v972 = vunpack.c.l.bf16 %v844
        %v973 = vunpack.c.l.bf16 %v845
        %v974 = vunpack.c.l.bf16 %v846
        %v975 = vunpack.c.l.bf16 %v847
        %v976 = vunpack.c.l.bf16 %v848
        %v977 = vunpack.c.l.bf16 %v849
        %v978 = vunpack.c.l.bf16 %v850
        %v979 = vunpack.c.l.bf16 %v851
        %v980 = vunpack.c.l.bf16 %v852
        %v981 = vunpack.c.l.bf16 %v853
        %v982 = vunpack.c.l.bf16 %v854
        %v983 = vunpack.c.l.bf16 %v855
        %v984 = vunpack.c.l.bf16 %v856
        %v985 = vunpack.c.l.bf16 %v857
        %v986 = vunpack.c.l.bf16 %v858
        %v987 = vunpack.c.l.bf16 %v859
        %v988 = vunpack.c.l.bf16 %v860
        %v989 = vunpack.c.l.bf16 %v861
        %v990 = vunpack.c.l.bf16 %v862
        %v991 = vunpack.c.l.bf16 %v863
        %v992 = vunpack.c.l.bf16 %v864
        %v993 = vunpack.c.l.bf16 %v865
        %v994 = vunpack.c.l.bf16 %v866
        %v995 = vunpack.c.l.bf16 %v867
        %v996 = vunpack.c.l.bf16 %v868
        %v997 = vunpack.c.l.bf16 %v869
        %v998 = vunpack.c.l.bf16 %v870
        %v999 = vunpack.c.l.bf16 %v871
        %v1000 = vunpack.c.l.bf16 %v872
        %v1001 = vunpack.c.l.bf16 %v873
        %vm1002 = vcmask 130048
        %v1003 = vsel %vm1002, %v874, 0.0
        %1004 = vadd.xlane.f32.xlu0 %v1003
        %v1005 = vpop.xlane.xlu0 %1004
        %v1006 = vsel %vm1002, %v875, 0.0
        %1007 = vadd.xlane.f32.xlu0 %v1006
        %v1008 = vpop.xlane.xlu0 %1007
        %v1009 = vsel %vm1002, %v876, 0.0
        %1010 = vadd.xlane.f32.xlu0 %v1009
        %v1011 = vpop.xlane.xlu0 %1010
        %v1012 = vsel %vm1002, %v877, 0.0
        %1013 = vadd.xlane.f32.xlu0 %v1012
        %v1014 = vpop.xlane.xlu0 %1013
        %v1015 = vsel %vm1002, %v878, 0.0
        %1016 = vadd.xlane.f32.xlu0 %v1015
        %v1017 = vpop.xlane.xlu0 %1016
        %v1018 = vsel %vm1002, %v879, 0.0
        %1019 = vadd.xlane.f32.xlu0 %v1018
        %v1020 = vpop.xlane.xlu0 %1019
        %v1021 = vsel %vm1002, %v880, 0.0
        %1022 = vadd.xlane.f32.xlu0 %v1021
        %v1023 = vpop.xlane.xlu0 %1022
        %v1024 = vsel %vm1002, %v881, 0.0
        %1025 = vadd.xlane.f32.xlu0 %v1024
        %v1026 = vpop.xlane.xlu0 %1025
        %v1027 = vsel %vm1002, %v882, 0.0
        %1028 = vadd.xlane.f32.xlu0 %v1027
        %v1029 = vpop.xlane.xlu0 %1028
        %v1030 = vsel %vm1002, %v883, 0.0
        %1031 = vadd.xlane.f32.xlu0 %v1030
        %v1032 = vpop.xlane.xlu0 %1031
        %v1033 = vsel %vm1002, %v884, 0.0
        %1034 = vadd.xlane.f32.xlu0 %v1033
        %v1035 = vpop.xlane.xlu0 %1034
        %v1036 = vsel %vm1002, %v885, 0.0
        %1037 = vadd.xlane.f32.xlu0 %v1036
        %v1038 = vpop.xlane.xlu0 %1037
        %v1039 = vsel %vm1002, %v886, 0.0
        %1040 = vadd.xlane.f32.xlu0 %v1039
        %v1041 = vpop.xlane.xlu0 %1040
        %v1042 = vsel %vm1002, %v887, 0.0
        %1043 = vadd.xlane.f32.xlu0 %v1042
        %v1044 = vpop.xlane.xlu0 %1043
        %v1045 = vsel %vm1002, %v888, 0.0
        %1046 = vadd.xlane.f32.xlu0 %v1045
        %v1047 = vpop.xlane.xlu0 %1046
        %v1048 = vsel %vm1002, %v889, 0.0
        %1049 = vadd.xlane.f32.xlu0 %v1048
        %v1050 = vpop.xlane.xlu0 %1049
        %v1051 = vsel %vm1002, %v890, 0.0
        %1052 = vadd.xlane.f32.xlu0 %v1051
        %v1053 = vpop.xlane.xlu0 %1052
        %v1054 = vsel %vm1002, %v891, 0.0
        %1055 = vadd.xlane.f32.xlu0 %v1054
        %v1056 = vpop.xlane.xlu0 %1055
        %v1057 = vsel %vm1002, %v892, 0.0
        %1058 = vadd.xlane.f32.xlu0 %v1057
        %v1059 = vpop.xlane.xlu0 %1058
        %v1060 = vsel %vm1002, %v893, 0.0
        %1061 = vadd.xlane.f32.xlu0 %v1060
        %v1062 = vpop.xlane.xlu0 %1061
        %v1063 = vsel %vm1002, %v894, 0.0
        %1064 = vadd.xlane.f32.xlu0 %v1063
        %v1065 = vpop.xlane.xlu0 %1064
        %v1066 = vsel %vm1002, %v895, 0.0
        %1067 = vadd.xlane.f32.xlu0 %v1066
        %v1068 = vpop.xlane.xlu0 %1067
        %v1069 = vsel %vm1002, %v896, 0.0
        %1070 = vadd.xlane.f32.xlu0 %v1069
        %v1071 = vpop.xlane.xlu0 %1070
        %v1072 = vsel %vm1002, %v897, 0.0
        %1073 = vadd.xlane.f32.xlu0 %v1072
        %v1074 = vpop.xlane.xlu0 %1073
        %v1075 = vsel %vm1002, %v898, 0.0
        %1076 = vadd.xlane.f32.xlu0 %v1075
        %v1077 = vpop.xlane.xlu0 %1076
        %v1078 = vsel %vm1002, %v899, 0.0
        %1079 = vadd.xlane.f32.xlu0 %v1078
        %v1080 = vpop.xlane.xlu0 %1079
        %v1081 = vsel %vm1002, %v900, 0.0
        %1082 = vadd.xlane.f32.xlu0 %v1081
        %v1083 = vpop.xlane.xlu0 %1082
        %v1084 = vsel %vm1002, %v901, 0.0
        %1085 = vadd.xlane.f32.xlu0 %v1084
        %v1086 = vpop.xlane.xlu0 %1085
        %v1087 = vsel %vm1002, %v902, 0.0
        %1088 = vadd.xlane.f32.xlu0 %v1087
        %v1089 = vpop.xlane.xlu0 %1088
        %v1090 = vsel %vm1002, %v903, 0.0
        %1091 = vadd.xlane.f32.xlu0 %v1090
        %v1092 = vpop.xlane.xlu0 %1091
        %v1093 = vsel %vm1002, %v904, 0.0
        %1094 = vadd.xlane.f32.xlu0 %v1093
        %v1095 = vpop.xlane.xlu0 %1094
        %v1096 = vsel %vm1002, %v905, 0.0
        %1097 = vadd.xlane.f32.xlu0 %v1096
        %v1098 = vpop.xlane.xlu0 %1097
        %v1099 = vsel %vm1002, %v906, 0.0
        %1100 = vadd.xlane.f32.xlu0 %v1099
        %v1101 = vpop.xlane.xlu0 %1100
        %v1102 = vsel %vm1002, %v907, 0.0
        %1103 = vadd.xlane.f32.xlu0 %v1102
        %v1104 = vpop.xlane.xlu0 %1103
        %v1105 = vsel %vm1002, %v908, 0.0
        %1106 = vadd.xlane.f32.xlu0 %v1105
        %v1107 = vpop.xlane.xlu0 %1106
        %v1108 = vsel %vm1002, %v909, 0.0
        %1109 = vadd.xlane.f32.xlu0 %v1108
        %v1110 = vpop.xlane.xlu0 %1109
        %v1111 = vsel %vm1002, %v910, 0.0
        %1112 = vadd.xlane.f32.xlu0 %v1111
        %v1113 = vpop.xlane.xlu0 %1112
        %v1114 = vsel %vm1002, %v911, 0.0
        %1115 = vadd.xlane.f32.xlu0 %v1114
        %v1116 = vpop.xlane.xlu0 %1115
        %v1117 = vsel %vm1002, %v912, 0.0
        %1118 = vadd.xlane.f32.xlu0 %v1117
        %v1119 = vpop.xlane.xlu0 %1118
        %v1120 = vsel %vm1002, %v913, 0.0
        %1121 = vadd.xlane.f32.xlu0 %v1120
        %v1122 = vpop.xlane.xlu0 %1121
        %v1123 = vsel %vm1002, %v914, 0.0
        %1124 = vadd.xlane.f32.xlu0 %v1123
        %v1125 = vpop.xlane.xlu0 %1124
        %v1126 = vsel %vm1002, %v915, 0.0
        %1127 = vadd.xlane.f32.xlu0 %v1126
        %v1128 = vpop.xlane.xlu0 %1127
        %v1129 = vsel %vm1002, %v916, 0.0
        %1130 = vadd.xlane.f32.xlu0 %v1129
        %v1131 = vpop.xlane.xlu0 %1130
        %v1132 = vsel %vm1002, %v917, 0.0
        %1133 = vadd.xlane.f32.xlu0 %v1132
        %v1134 = vpop.xlane.xlu0 %1133
        %v1135 = vsel %vm1002, %v918, 0.0
        %1136 = vadd.xlane.f32.xlu0 %v1135
        %v1137 = vpop.xlane.xlu0 %1136
        %v1138 = vsel %vm1002, %v919, 0.0
        %1139 = vadd.xlane.f32.xlu0 %v1138
        %v1140 = vpop.xlane.xlu0 %1139
        %v1141 = vsel %vm1002, %v920, 0.0
        %1142 = vadd.xlane.f32.xlu0 %v1141
        %v1143 = vpop.xlane.xlu0 %1142
        %v1144 = vsel %vm1002, %v921, 0.0
        %1145 = vadd.xlane.f32.xlu0 %v1144
        %v1146 = vpop.xlane.xlu0 %1145
        %v1147 = vsel %vm1002, %v922, 0.0
        %1148 = vadd.xlane.f32.xlu0 %v1147
        %v1149 = vpop.xlane.xlu0 %1148
        %v1150 = vsel %vm1002, %v923, 0.0
        %1151 = vadd.xlane.f32.xlu0 %v1150
        %v1152 = vpop.xlane.xlu0 %1151
        %v1153 = vsel %vm1002, %v924, 0.0
        %1154 = vadd.xlane.f32.xlu0 %v1153
        %v1155 = vpop.xlane.xlu0 %1154
        %v1156 = vsel %vm1002, %v925, 0.0
        %1157 = vadd.xlane.f32.xlu0 %v1156
        %v1158 = vpop.xlane.xlu0 %1157
        %v1159 = vsel %vm1002, %v926, 0.0
        %1160 = vadd.xlane.f32.xlu0 %v1159
        %v1161 = vpop.xlane.xlu0 %1160
        %v1162 = vsel %vm1002, %v927, 0.0
        %1163 = vadd.xlane.f32.xlu0 %v1162
        %v1164 = vpop.xlane.xlu0 %1163
        %v1165 = vsel %vm1002, %v928, 0.0
        %1166 = vadd.xlane.f32.xlu0 %v1165
        %v1167 = vpop.xlane.xlu0 %1166
        %v1168 = vsel %vm1002, %v929, 0.0
        %1169 = vadd.xlane.f32.xlu0 %v1168
        %v1170 = vpop.xlane.xlu0 %1169
        %v1171 = vsel %vm1002, %v930, 0.0
        %1172 = vadd.xlane.f32.xlu0 %v1171
        %v1173 = vpop.xlane.xlu0 %1172
        %v1174 = vsel %vm1002, %v931, 0.0
        %1175 = vadd.xlane.f32.xlu0 %v1174
        %v1176 = vpop.xlane.xlu0 %1175
        %v1177 = vsel %vm1002, %v932, 0.0
        %1178 = vadd.xlane.f32.xlu0 %v1177
        %v1179 = vpop.xlane.xlu0 %1178
        %v1180 = vsel %vm1002, %v933, 0.0
        %1181 = vadd.xlane.f32.xlu0 %v1180
        %v1182 = vpop.xlane.xlu0 %1181
        %v1183 = vsel %vm1002, %v934, 0.0
        %1184 = vadd.xlane.f32.xlu0 %v1183
        %v1185 = vpop.xlane.xlu0 %1184
        %v1186 = vsel %vm1002, %v935, 0.0
        %1187 = vadd.xlane.f32.xlu0 %v1186
        %v1188 = vpop.xlane.xlu0 %1187
        %v1189 = vsel %vm1002, %v936, 0.0
        %1190 = vadd.xlane.f32.xlu0 %v1189
        %v1191 = vpop.xlane.xlu0 %1190
        %v1192 = vsel %vm1002, %v937, 0.0
        %1193 = vadd.xlane.f32.xlu0 %v1192
        %v1194 = vpop.xlane.xlu0 %1193
        %v1195 = vsel %vm1002, %v938, 0.0
        %1196 = vadd.xlane.f32.xlu0 %v1195
        %v1197 = vpop.xlane.xlu0 %1196
        %v1198 = vsel %vm1002, %v939, 0.0
        %1199 = vadd.xlane.f32.xlu0 %v1198
        %v1200 = vpop.xlane.xlu0 %1199
        %v1201 = vsel %vm1002, %v940, 0.0
        %1202 = vadd.xlane.f32.xlu0 %v1201
        %v1203 = vpop.xlane.xlu0 %1202
        %v1204 = vsel %vm1002, %v941, 0.0
        %1205 = vadd.xlane.f32.xlu0 %v1204
        %v1206 = vpop.xlane.xlu0 %1205
        %v1207 = vsel %vm1002, %v942, 0.0
        %1208 = vadd.xlane.f32.xlu0 %v1207
        %v1209 = vpop.xlane.xlu0 %1208
        %v1210 = vsel %vm1002, %v943, 0.0
        %1211 = vadd.xlane.f32.xlu0 %v1210
        %v1212 = vpop.xlane.xlu0 %1211
        %v1213 = vsel %vm1002, %v944, 0.0
        %1214 = vadd.xlane.f32.xlu0 %v1213
        %v1215 = vpop.xlane.xlu0 %1214
        %v1216 = vsel %vm1002, %v945, 0.0
        %1217 = vadd.xlane.f32.xlu0 %v1216
        %v1218 = vpop.xlane.xlu0 %1217
        %v1219 = vsel %vm1002, %v946, 0.0
        %1220 = vadd.xlane.f32.xlu0 %v1219
        %v1221 = vpop.xlane.xlu0 %1220
        %v1222 = vsel %vm1002, %v947, 0.0
        %1223 = vadd.xlane.f32.xlu0 %v1222
        %v1224 = vpop.xlane.xlu0 %1223
        %v1225 = vsel %vm1002, %v948, 0.0
        %1226 = vadd.xlane.f32.xlu0 %v1225
        %v1227 = vpop.xlane.xlu0 %1226
        %v1228 = vsel %vm1002, %v949, 0.0
        %1229 = vadd.xlane.f32.xlu0 %v1228
        %v1230 = vpop.xlane.xlu0 %1229
        %v1231 = vsel %vm1002, %v950, 0.0
        %1232 = vadd.xlane.f32.xlu0 %v1231
        %v1233 = vpop.xlane.xlu0 %1232
        %v1234 = vsel %vm1002, %v951, 0.0
        %1235 = vadd.xlane.f32.xlu0 %v1234
        %v1236 = vpop.xlane.xlu0 %1235
        %v1237 = vsel %vm1002, %v952, 0.0
        %1238 = vadd.xlane.f32.xlu0 %v1237
        %v1239 = vpop.xlane.xlu0 %1238
        %v1240 = vsel %vm1002, %v953, 0.0
        %1241 = vadd.xlane.f32.xlu0 %v1240
        %v1242 = vpop.xlane.xlu0 %1241
        %v1243 = vsel %vm1002, %v954, 0.0
        %1244 = vadd.xlane.f32.xlu0 %v1243
        %v1245 = vpop.xlane.xlu0 %1244
        %v1246 = vsel %vm1002, %v955, 0.0
        %1247 = vadd.xlane.f32.xlu0 %v1246
        %v1248 = vpop.xlane.xlu0 %1247
        %v1249 = vsel %vm1002, %v956, 0.0
        %1250 = vadd.xlane.f32.xlu0 %v1249
        %v1251 = vpop.xlane.xlu0 %1250
        %v1252 = vsel %vm1002, %v957, 0.0
        %1253 = vadd.xlane.f32.xlu0 %v1252
        %v1254 = vpop.xlane.xlu0 %1253
        %v1255 = vsel %vm1002, %v958, 0.0
        %1256 = vadd.xlane.f32.xlu0 %v1255
        %v1257 = vpop.xlane.xlu0 %1256
        %v1258 = vsel %vm1002, %v959, 0.0
        %1259 = vadd.xlane.f32.xlu0 %v1258
        %v1260 = vpop.xlane.xlu0 %1259
        %v1261 = vsel %vm1002, %v960, 0.0
        %1262 = vadd.xlane.f32.xlu0 %v1261
        %v1263 = vpop.xlane.xlu0 %1262
        %v1264 = vsel %vm1002, %v961, 0.0
        %1265 = vadd.xlane.f32.xlu0 %v1264
        %v1266 = vpop.xlane.xlu0 %1265
        %v1267 = vsel %vm1002, %v962, 0.0
        %1268 = vadd.xlane.f32.xlu0 %v1267
        %v1269 = vpop.xlane.xlu0 %1268
        %v1270 = vsel %vm1002, %v963, 0.0
        %1271 = vadd.xlane.f32.xlu0 %v1270
        %v1272 = vpop.xlane.xlu0 %1271
        %v1273 = vsel %vm1002, %v964, 0.0
        %1274 = vadd.xlane.f32.xlu0 %v1273
        %v1275 = vpop.xlane.xlu0 %1274
        %v1276 = vsel %vm1002, %v965, 0.0
        %1277 = vadd.xlane.f32.xlu0 %v1276
        %v1278 = vpop.xlane.xlu0 %1277
        %v1279 = vsel %vm1002, %v966, 0.0
        %1280 = vadd.xlane.f32.xlu0 %v1279
        %v1281 = vpop.xlane.xlu0 %1280
        %v1282 = vsel %vm1002, %v967, 0.0
        %1283 = vadd.xlane.f32.xlu0 %v1282
        %v1284 = vpop.xlane.xlu0 %1283
        %v1285 = vsel %vm1002, %v968, 0.0
        %1286 = vadd.xlane.f32.xlu0 %v1285
        %v1287 = vpop.xlane.xlu0 %1286
        %v1288 = vsel %vm1002, %v969, 0.0
        %1289 = vadd.xlane.f32.xlu0 %v1288
        %v1290 = vpop.xlane.xlu0 %1289
        %v1291 = vsel %vm1002, %v970, 0.0
        %1292 = vadd.xlane.f32.xlu0 %v1291
        %v1293 = vpop.xlane.xlu0 %1292
        %v1294 = vsel %vm1002, %v971, 0.0
        %1295 = vadd.xlane.f32.xlu0 %v1294
        %v1296 = vpop.xlane.xlu0 %1295
        %v1297 = vsel %vm1002, %v972, 0.0
        %1298 = vadd.xlane.f32.xlu0 %v1297
        %v1299 = vpop.xlane.xlu0 %1298
        %v1300 = vsel %vm1002, %v973, 0.0
        %1301 = vadd.xlane.f32.xlu0 %v1300
        %v1302 = vpop.xlane.xlu0 %1301
        %v1303 = vsel %vm1002, %v974, 0.0
        %1304 = vadd.xlane.f32.xlu0 %v1303
        %v1305 = vpop.xlane.xlu0 %1304
        %v1306 = vsel %vm1002, %v975, 0.0
        %1307 = vadd.xlane.f32.xlu0 %v1306
        %v1308 = vpop.xlane.xlu0 %1307
        %v1309 = vsel %vm1002, %v976, 0.0
        %1310 = vadd.xlane.f32.xlu0 %v1309
        %v1311 = vpop.xlane.xlu0 %1310
        %v1312 = vsel %vm1002, %v977, 0.0
        %1313 = vadd.xlane.f32.xlu0 %v1312
        %v1314 = vpop.xlane.xlu0 %1313
        %v1315 = vsel %vm1002, %v978, 0.0
        %1316 = vadd.xlane.f32.xlu0 %v1315
        %v1317 = vpop.xlane.xlu0 %1316
        %v1318 = vsel %vm1002, %v979, 0.0
        %1319 = vadd.xlane.f32.xlu0 %v1318
        %v1320 = vpop.xlane.xlu0 %1319
        %v1321 = vsel %vm1002, %v980, 0.0
        %1322 = vadd.xlane.f32.xlu0 %v1321
        %v1323 = vpop.xlane.xlu0 %1322
        %v1324 = vsel %vm1002, %v981, 0.0
        %1325 = vadd.xlane.f32.xlu0 %v1324
        %v1326 = vpop.xlane.xlu0 %1325
        %v1327 = vsel %vm1002, %v982, 0.0
        %1328 = vadd.xlane.f32.xlu0 %v1327
        %v1329 = vpop.xlane.xlu0 %1328
        %v1330 = vsel %vm1002, %v983, 0.0
        %1331 = vadd.xlane.f32.xlu0 %v1330
        %v1332 = vpop.xlane.xlu0 %1331
        %v1333 = vsel %vm1002, %v984, 0.0
        %1334 = vadd.xlane.f32.xlu0 %v1333
        %v1335 = vpop.xlane.xlu0 %1334
        %v1336 = vsel %vm1002, %v985, 0.0
        %1337 = vadd.xlane.f32.xlu0 %v1336
        %v1338 = vpop.xlane.xlu0 %1337
        %v1339 = vsel %vm1002, %v986, 0.0
        %1340 = vadd.xlane.f32.xlu0 %v1339
        %v1341 = vpop.xlane.xlu0 %1340
        %v1342 = vsel %vm1002, %v987, 0.0
        %1343 = vadd.xlane.f32.xlu0 %v1342
        %v1344 = vpop.xlane.xlu0 %1343
        %v1345 = vsel %vm1002, %v988, 0.0
        %1346 = vadd.xlane.f32.xlu0 %v1345
        %v1347 = vpop.xlane.xlu0 %1346
        %v1348 = vsel %vm1002, %v989, 0.0
        %1349 = vadd.xlane.f32.xlu0 %v1348
        %v1350 = vpop.xlane.xlu0 %1349
        %v1351 = vsel %vm1002, %v990, 0.0
        %1352 = vadd.xlane.f32.xlu0 %v1351
        %v1353 = vpop.xlane.xlu0 %1352
        %v1354 = vsel %vm1002, %v991, 0.0
        %1355 = vadd.xlane.f32.xlu0 %v1354
        %v1356 = vpop.xlane.xlu0 %1355
        %v1357 = vsel %vm1002, %v992, 0.0
        %1358 = vadd.xlane.f32.xlu0 %v1357
        %v1359 = vpop.xlane.xlu0 %1358
        %v1360 = vsel %vm1002, %v993, 0.0
        %1361 = vadd.xlane.f32.xlu0 %v1360
        %v1362 = vpop.xlane.xlu0 %1361
        %v1363 = vsel %vm1002, %v994, 0.0
        %1364 = vadd.xlane.f32.xlu0 %v1363
        %v1365 = vpop.xlane.xlu0 %1364
        %v1366 = vsel %vm1002, %v995, 0.0
        %1367 = vadd.xlane.f32.xlu0 %v1366
        %v1368 = vpop.xlane.xlu0 %1367
        %v1369 = vsel %vm1002, %v996, 0.0
        %1370 = vadd.xlane.f32.xlu0 %v1369
        %v1371 = vpop.xlane.xlu0 %1370
        %v1372 = vsel %vm1002, %v997, 0.0
        %1373 = vadd.xlane.f32.xlu0 %v1372
        %v1374 = vpop.xlane.xlu0 %1373
        %v1375 = vsel %vm1002, %v998, 0.0
        %1376 = vadd.xlane.f32.xlu0 %v1375
        %v1377 = vpop.xlane.xlu0 %1376
        %v1378 = vsel %vm1002, %v999, 0.0
        %1379 = vadd.xlane.f32.xlu0 %v1378
        %v1380 = vpop.xlane.xlu0 %1379
        %v1381 = vsel %vm1002, %v1000, 0.0
        %1382 = vadd.xlane.f32.xlu0 %v1381
        %v1383 = vpop.xlane.xlu0 %1382
        %v1384 = vsel %vm1002, %v1001, 0.0
        %1385 = vadd.xlane.f32.xlu0 %v1384
        %v1386 = vpop.xlane.xlu0 %1385
        %s1387 = smul.u32 %s20, 512
        %s1388 = sshra.s32 %s1387, 3
        %s1389 = sand.u32 %s1387, 7
        %s1390 = smul.addr %s1388, 4
        %s1391 = scalar_lea.vmem %s1, %s1390
        %v1392 = vld [vmem:[%s1391] sm:$0xf]
        %v1393 = vld [vmem:[%s1391 + $0x4] sm:$0xf]
        %v1394 = vld [vmem:[%s1391 + $0x8] sm:$0xf]
        %v1395 = vld [vmem:[%s1391 + $0xc] sm:$0xf]
        %v1396 = vld [vmem:[%s1391 + $0x10] sm:$0xf]
        %v1397 = vld [vmem:[%s1391 + $0x14] sm:$0xf]
        %v1398 = vld [vmem:[%s1391 + $0x18] sm:$0xf]
        %v1399 = vld [vmem:[%s1391 + $0x1c] sm:$0xf]
        %v1400 = vld [vmem:[%s1391 + $0x20] sm:$0xf]
        %v1401 = vld [vmem:[%s1391 + $0x24] sm:$0xf]
        %v1402 = vld [vmem:[%s1391 + $0x28] sm:$0xf]
        %v1403 = vld [vmem:[%s1391 + $0x2c] sm:$0xf]
        %v1404 = vld [vmem:[%s1391 + $0x30] sm:$0xf]
        %v1405 = vld [vmem:[%s1391 + $0x34] sm:$0xf]
        %v1406 = vld [vmem:[%s1391 + $0x38] sm:$0xf]
        %v1407 = vld [vmem:[%s1391 + $0x3c] sm:$0xf]
        %v1408 = vld [vmem:[%s1391 + $0x40] sm:$0xf]
        %v1409 = vld [vmem:[%s1391 + $0x44] sm:$0xf]
        %v1410 = vld [vmem:[%s1391 + $0x48] sm:$0xf]
        %v1411 = vld [vmem:[%s1391 + $0x4c] sm:$0xf]
        %v1412 = vld [vmem:[%s1391 + $0x50] sm:$0xf]
        %v1413 = vld [vmem:[%s1391 + $0x54] sm:$0xf]
        %v1414 = vld [vmem:[%s1391 + $0x58] sm:$0xf]
        %v1415 = vld [vmem:[%s1391 + $0x5c] sm:$0xf]
        %v1416 = vld [vmem:[%s1391 + $0x60] sm:$0xf]
        %v1417 = vld [vmem:[%s1391 + $0x64] sm:$0xf]
        %v1418 = vld [vmem:[%s1391 + $0x68] sm:$0xf]
        %v1419 = vld [vmem:[%s1391 + $0x6c] sm:$0xf]
        %v1420 = vld [vmem:[%s1391 + $0x70] sm:$0xf]
        %v1421 = vld [vmem:[%s1391 + $0x74] sm:$0xf]
        %v1422 = vld [vmem:[%s1391 + $0x78] sm:$0xf]
        %v1423 = vld [vmem:[%s1391 + $0x7c] sm:$0xf]
        %v1424 = vld [vmem:[%s1391 + $0x80] sm:$0xf]
        %v1425 = vld [vmem:[%s1391 + $0x84] sm:$0xf]
        %v1426 = vld [vmem:[%s1391 + $0x88] sm:$0xf]
        %v1427 = vld [vmem:[%s1391 + $0x8c] sm:$0xf]
        %v1428 = vld [vmem:[%s1391 + $0x90] sm:$0xf]
        %v1429 = vld [vmem:[%s1391 + $0x94] sm:$0xf]
        %v1430 = vld [vmem:[%s1391 + $0x98] sm:$0xf]
        %v1431 = vld [vmem:[%s1391 + $0x9c] sm:$0xf]
        %v1432 = vld [vmem:[%s1391 + $0xa0] sm:$0xf]
        %v1433 = vld [vmem:[%s1391 + $0xa4] sm:$0xf]
        %v1434 = vld [vmem:[%s1391 + $0xa8] sm:$0xf]
        %v1435 = vld [vmem:[%s1391 + $0xac] sm:$0xf]
        %v1436 = vld [vmem:[%s1391 + $0xb0] sm:$0xf]
        %v1437 = vld [vmem:[%s1391 + $0xb4] sm:$0xf]
        %v1438 = vld [vmem:[%s1391 + $0xb8] sm:$0xf]
        %v1439 = vld [vmem:[%s1391 + $0xbc] sm:$0xf]
        %v1440 = vld [vmem:[%s1391 + $0xc0] sm:$0xf]
        %v1441 = vld [vmem:[%s1391 + $0xc4] sm:$0xf]
        %v1442 = vld [vmem:[%s1391 + $0xc8] sm:$0xf]
        %v1443 = vld [vmem:[%s1391 + $0xcc] sm:$0xf]
        %v1444 = vld [vmem:[%s1391 + $0xd0] sm:$0xf]
        %v1445 = vld [vmem:[%s1391 + $0xd4] sm:$0xf]
        %v1446 = vld [vmem:[%s1391 + $0xd8] sm:$0xf]
        %v1447 = vld [vmem:[%s1391 + $0xdc] sm:$0xf]
        %v1448 = vld [vmem:[%s1391 + $0xe0] sm:$0xf]
        %v1449 = vld [vmem:[%s1391 + $0xe4] sm:$0xf]
        %v1450 = vld [vmem:[%s1391 + $0xe8] sm:$0xf]
        %v1451 = vld [vmem:[%s1391 + $0xec] sm:$0xf]
        %v1452 = vld [vmem:[%s1391 + $0xf0] sm:$0xf]
        %v1453 = vld [vmem:[%s1391 + $0xf4] sm:$0xf]
        %v1454 = vld [vmem:[%s1391 + $0xf8] sm:$0xf]
        %v1455 = vld [vmem:[%s1391 + $0xfc] sm:$0xf]
        %v1456 = vld [vmem:[#allocation3] sm:$0x3]
        %v1457 = vpack.c.bf16 %v1008, %v1005
        %v1458 = vpack.c.bf16 %v1014, %v1011
        %v1459 = vpack.c.bf16 %v1020, %v1017
        %v1460 = vpack.c.bf16 %v1026, %v1023
        %v1461 = vpack.c.bf16 %v1032, %v1029
        %v1462 = vpack.c.bf16 %v1038, %v1035
        %v1463 = vpack.c.bf16 %v1044, %v1041
        %v1464 = vpack.c.bf16 %v1050, %v1047
        %v1465 = vpack.c.bf16 %v1056, %v1053
        %v1466 = vpack.c.bf16 %v1062, %v1059
        %v1467 = vpack.c.bf16 %v1068, %v1065
        %v1468 = vpack.c.bf16 %v1074, %v1071
        %v1469 = vpack.c.bf16 %v1080, %v1077
        %v1470 = vpack.c.bf16 %v1086, %v1083
        %v1471 = vpack.c.bf16 %v1092, %v1089
        %v1472 = vpack.c.bf16 %v1098, %v1095
        %v1473 = vpack.c.bf16 %v1104, %v1101
        %v1474 = vpack.c.bf16 %v1110, %v1107
        %v1475 = vpack.c.bf16 %v1116, %v1113
        %v1476 = vpack.c.bf16 %v1122, %v1119
        %v1477 = vpack.c.bf16 %v1128, %v1125
        %v1478 = vpack.c.bf16 %v1134, %v1131
        %v1479 = vpack.c.bf16 %v1140, %v1137
        %v1480 = vpack.c.bf16 %v1146, %v1143
        %v1481 = vpack.c.bf16 %v1152, %v1149
        %v1482 = vpack.c.bf16 %v1158, %v1155
        %v1483 = vpack.c.bf16 %v1164, %v1161
        %v1484 = vpack.c.bf16 %v1170, %v1167
        %v1485 = vpack.c.bf16 %v1176, %v1173
        %v1486 = vpack.c.bf16 %v1182, %v1179
        %v1487 = vpack.c.bf16 %v1188, %v1185
        %v1488 = vpack.c.bf16 %v1194, %v1191
        %v1489 = vpack.c.bf16 %v1200, %v1197
        %v1490 = vpack.c.bf16 %v1206, %v1203
        %v1491 = vpack.c.bf16 %v1212, %v1209
        %v1492 = vpack.c.bf16 %v1218, %v1215
        %v1493 = vpack.c.bf16 %v1224, %v1221
        %v1494 = vpack.c.bf16 %v1230, %v1227
        %v1495 = vpack.c.bf16 %v1236, %v1233
        %v1496 = vpack.c.bf16 %v1242, %v1239
        %v1497 = vpack.c.bf16 %v1248, %v1245
        %v1498 = vpack.c.bf16 %v1254, %v1251
        %v1499 = vpack.c.bf16 %v1260, %v1257
        %v1500 = vpack.c.bf16 %v1266, %v1263
        %v1501 = vpack.c.bf16 %v1272, %v1269
        %v1502 = vpack.c.bf16 %v1278, %v1275
        %v1503 = vpack.c.bf16 %v1284, %v1281
        %v1504 = vpack.c.bf16 %v1290, %v1287
        %v1505 = vpack.c.bf16 %v1296, %v1293
        %v1506 = vpack.c.bf16 %v1302, %v1299
        %v1507 = vpack.c.bf16 %v1308, %v1305
        %v1508 = vpack.c.bf16 %v1314, %v1311
        %v1509 = vpack.c.bf16 %v1320, %v1317
        %v1510 = vpack.c.bf16 %v1326, %v1323
        %v1511 = vpack.c.bf16 %v1332, %v1329
        %v1512 = vpack.c.bf16 %v1338, %v1335
        %v1513 = vpack.c.bf16 %v1344, %v1341
        %v1514 = vpack.c.bf16 %v1350, %v1347
        %v1515 = vpack.c.bf16 %v1356, %v1353
        %v1516 = vpack.c.bf16 %v1362, %v1359
        %v1517 = vpack.c.bf16 %v1368, %v1365
        %v1518 = vpack.c.bf16 %v1374, %v1371
        %v1519 = vpack.c.bf16 %v1380, %v1377
        %v1520 = vpack.c.bf16 %v1386, %v1383
        %v1585 = vunpack.c.l.b16 %v1457
        %v1586 = vunpack.c.h.b16 %v1457
        %v1587 = vunpack.c.l.b16 %v1458
        %v1588 = vunpack.c.h.b16 %v1458
        %v1589 = vunpack.c.l.b16 %v1459
        %v1590 = vunpack.c.h.b16 %v1459
        %v1591 = vunpack.c.l.b16 %v1460
        %v1592 = vunpack.c.h.b16 %v1460
        %v1593 = vunpack.c.l.b16 %v1461
        %v1594 = vunpack.c.h.b16 %v1461
        %v1595 = vunpack.c.l.b16 %v1462
        %v1596 = vunpack.c.h.b16 %v1462
        %v1597 = vunpack.c.l.b16 %v1463
        %v1598 = vunpack.c.h.b16 %v1463
        %v1599 = vunpack.c.l.b16 %v1464
        %v1600 = vunpack.c.h.b16 %v1464
        %v1601 = vunpack.c.l.b16 %v1465
        %v1602 = vunpack.c.h.b16 %v1465
        %v1603 = vunpack.c.l.b16 %v1466
        %v1604 = vunpack.c.h.b16 %v1466
        %v1605 = vunpack.c.l.b16 %v1467
        %v1606 = vunpack.c.h.b16 %v1467
        %v1607 = vunpack.c.l.b16 %v1468
        %v1608 = vunpack.c.h.b16 %v1468
        %v1609 = vunpack.c.l.b16 %v1469
        %v1610 = vunpack.c.h.b16 %v1469
        %v1611 = vunpack.c.l.b16 %v1470
        %v1612 = vunpack.c.h.b16 %v1470
        %v1613 = vunpack.c.l.b16 %v1471
        %v1614 = vunpack.c.h.b16 %v1471
        %v1615 = vunpack.c.l.b16 %v1472
        %v1616 = vunpack.c.h.b16 %v1472
        %v1617 = vunpack.c.l.b16 %v1473
        %v1618 = vunpack.c.h.b16 %v1473
        %v1619 = vunpack.c.l.b16 %v1474
        %v1620 = vunpack.c.h.b16 %v1474
        %v1621 = vunpack.c.l.b16 %v1475
        %v1622 = vunpack.c.h.b16 %v1475
        %v1623 = vunpack.c.l.b16 %v1476
        %v1624 = vunpack.c.h.b16 %v1476
        %v1625 = vunpack.c.l.b16 %v1477
        %v1626 = vunpack.c.h.b16 %v1477
        %v1627 = vunpack.c.l.b16 %v1478
        %v1628 = vunpack.c.h.b16 %v1478
        %v1629 = vunpack.c.l.b16 %v1479
        %v1630 = vunpack.c.h.b16 %v1479
        %v1631 = vunpack.c.l.b16 %v1480
        %v1632 = vunpack.c.h.b16 %v1480
        %v1633 = vunpack.c.l.b16 %v1481
        %v1634 = vunpack.c.h.b16 %v1481
        %v1635 = vunpack.c.l.b16 %v1482
        %v1636 = vunpack.c.h.b16 %v1482
        %v1637 = vunpack.c.l.b16 %v1483
        %v1638 = vunpack.c.h.b16 %v1483
        %v1639 = vunpack.c.l.b16 %v1484
        %v1640 = vunpack.c.h.b16 %v1484
        %v1641 = vunpack.c.l.b16 %v1485
        %v1642 = vunpack.c.h.b16 %v1485
        %v1643 = vunpack.c.l.b16 %v1486
        %v1644 = vunpack.c.h.b16 %v1486
        %v1645 = vunpack.c.l.b16 %v1487
        %v1646 = vunpack.c.h.b16 %v1487
        %v1647 = vunpack.c.l.b16 %v1488
        %v1648 = vunpack.c.h.b16 %v1488
        %v1649 = vunpack.c.l.b16 %v1489
        %v1650 = vunpack.c.h.b16 %v1489
        %v1651 = vunpack.c.l.b16 %v1490
        %v1652 = vunpack.c.h.b16 %v1490
        %v1653 = vunpack.c.l.b16 %v1491
        %v1654 = vunpack.c.h.b16 %v1491
        %v1655 = vunpack.c.l.b16 %v1492
        %v1656 = vunpack.c.h.b16 %v1492
        %v1657 = vunpack.c.l.b16 %v1493
        %v1658 = vunpack.c.h.b16 %v1493
        %v1659 = vunpack.c.l.b16 %v1494
        %v1660 = vunpack.c.h.b16 %v1494
        %v1661 = vunpack.c.l.b16 %v1495
        %v1662 = vunpack.c.h.b16 %v1495
        %v1663 = vunpack.c.l.b16 %v1496
        %v1664 = vunpack.c.h.b16 %v1496
        %v1665 = vunpack.c.l.b16 %v1497
        %v1666 = vunpack.c.h.b16 %v1497
        %v1667 = vunpack.c.l.b16 %v1498
        %v1668 = vunpack.c.h.b16 %v1498
        %v1669 = vunpack.c.l.b16 %v1499
        %v1670 = vunpack.c.h.b16 %v1499
        %v1671 = vunpack.c.l.b16 %v1500
        %v1672 = vunpack.c.h.b16 %v1500
        %v1673 = vunpack.c.l.b16 %v1501
        %v1674 = vunpack.c.h.b16 %v1501
        %v1675 = vunpack.c.l.b16 %v1502
        %v1676 = vunpack.c.h.b16 %v1502
        %v1677 = vunpack.c.l.b16 %v1503
        %v1678 = vunpack.c.h.b16 %v1503
        %v1679 = vunpack.c.l.b16 %v1504
        %v1680 = vunpack.c.h.b16 %v1504
        %v1681 = vunpack.c.l.b16 %v1505
        %v1682 = vunpack.c.h.b16 %v1505
        %v1683 = vunpack.c.l.b16 %v1506
        %v1684 = vunpack.c.h.b16 %v1506
        %v1685 = vunpack.c.l.b16 %v1507
        %v1686 = vunpack.c.h.b16 %v1507
        %v1687 = vunpack.c.l.b16 %v1508
        %v1688 = vunpack.c.h.b16 %v1508
        %v1689 = vunpack.c.l.b16 %v1509
        %v1690 = vunpack.c.h.b16 %v1509
        %v1691 = vunpack.c.l.b16 %v1510
        %v1692 = vunpack.c.h.b16 %v1510
        %v1693 = vunpack.c.l.b16 %v1511
        %v1694 = vunpack.c.h.b16 %v1511
        %v1695 = vunpack.c.l.b16 %v1512
        %v1696 = vunpack.c.h.b16 %v1512
        %v1697 = vunpack.c.l.b16 %v1513
        %v1698 = vunpack.c.h.b16 %v1513
        %v1699 = vunpack.c.l.b16 %v1514
        %v1700 = vunpack.c.h.b16 %v1514
        %v1701 = vunpack.c.l.b16 %v1515
        %v1702 = vunpack.c.h.b16 %v1515
        %v1703 = vunpack.c.l.b16 %v1516
        %v1704 = vunpack.c.h.b16 %v1516
        %v1705 = vunpack.c.l.b16 %v1517
        %v1706 = vunpack.c.h.b16 %v1517
        %v1707 = vunpack.c.l.b16 %v1518
        %v1708 = vunpack.c.h.b16 %v1518
        %v1709 = vunpack.c.l.b16 %v1519
        %v1710 = vunpack.c.h.b16 %v1519
        %v1711 = vunpack.c.l.b16 %v1520
        %v1712 = vunpack.c.h.b16 %v1520
        %v1713 = vlaneseq
        %v1714 = vand.u32 %v1713, 127
        %v1715 = vlaneseq
        %v1716 = vshrl.u32 %v1715, 7
        %v1717 = vsub.s32 %v1714, %v1716
        %v1718 = vrot.slane %v1585, %v1717
        %v1719 = vadd.s32 %v1714, 4294967288
        %v1720 = vlaneseq
        %v1721 = vshrl.u32 %v1720, 7
        %v1722 = vsub.s32 %v1719, %v1721
        %v1723 = vrot.slane %v1586, %v1722
        %vm1724 = vcmask 130112
        %v1725 = vsel %vm1724, %v1723, %v1718
        %v1726 = vadd.s32 %v1714, 4294967280
        %v1727 = vlaneseq
        %v1728 = vshrl.u32 %v1727, 7
        %v1729 = vsub.s32 %v1726, %v1728
        %v1730 = vrot.slane %v1587, %v1729
        %vm1731 = vcmask 195712
        %v1732 = vsel %vm1731, %v1730, %v1725
        %v1733 = vadd.s32 %v1714, 4294967272
        %v1734 = vlaneseq
        %v1735 = vshrl.u32 %v1734, 7
        %v1736 = vsub.s32 %v1733, %v1735
        %v1737 = vrot.slane %v1588, %v1736
        %vm1738 = vcmask 261312
        %v1739 = vsel %vm1738, %v1737, %v1732
        %v1740 = vadd.s32 %v1714, 4294967264
        %v1741 = vlaneseq
        %v1742 = vshrl.u32 %v1741, 7
        %v1743 = vsub.s32 %v1740, %v1742
        %v1744 = vrot.slane %v1589, %v1743
        %vm1745 = vcmask 326912
        %v1746 = vsel %vm1745, %v1744, %v1739
        %v1747 = vadd.s32 %v1714, 4294967256
        %v1748 = vlaneseq
        %v1749 = vshrl.u32 %v1748, 7
        %v1750 = vsub.s32 %v1747, %v1749
        %v1751 = vrot.slane %v1590, %v1750
        %vm1752 = vcmask 392512
        %v1753 = vsel %vm1752, %v1751, %v1746
        %v1754 = vadd.s32 %v1714, 4294967248
        %v1755 = vlaneseq
        %v1756 = vshrl.u32 %v1755, 7
        %v1757 = vsub.s32 %v1754, %v1756
        %v1758 = vrot.slane %v1591, %v1757
        %vm1759 = vcmask 458112
        %v1760 = vsel %vm1759, %v1758, %v1753
        %v1761 = vadd.s32 %v1714, 4294967240
        %v1762 = vlaneseq
        %v1763 = vshrl.u32 %v1762, 7
        %v1764 = vsub.s32 %v1761, %v1763
        %v1765 = vrot.slane %v1592, %v1764
        %vm1766 = vcmask 523712
        %v1767 = vsel %vm1766, %v1765, %v1760
        %v1768 = vadd.s32 %v1714, 4294967232
        %v1769 = vlaneseq
        %v1770 = vshrl.u32 %v1769, 7
        %v1771 = vsub.s32 %v1768, %v1770
        %v1772 = vrot.slane %v1593, %v1771
        %vm1773 = vcmask 589312
        %v1774 = vsel %vm1773, %v1772, %v1767
        %v1775 = vadd.s32 %v1714, 4294967224
        %v1776 = vlaneseq
        %v1777 = vshrl.u32 %v1776, 7
        %v1778 = vsub.s32 %v1775, %v1777
        %v1779 = vrot.slane %v1594, %v1778
        %vm1780 = vcmask 654912
        %v1781 = vsel %vm1780, %v1779, %v1774
        %v1782 = vadd.s32 %v1714, 4294967216
        %v1783 = vlaneseq
        %v1784 = vshrl.u32 %v1783, 7
        %v1785 = vsub.s32 %v1782, %v1784
        %v1786 = vrot.slane %v1595, %v1785
        %vm1787 = vcmask 720512
        %v1788 = vsel %vm1787, %v1786, %v1781
        %v1789 = vadd.s32 %v1714, 4294967208
        %v1790 = vlaneseq
        %v1791 = vshrl.u32 %v1790, 7
        %v1792 = vsub.s32 %v1789, %v1791
        %v1793 = vrot.slane %v1596, %v1792
        %vm1794 = vcmask 786112
        %v1795 = vsel %vm1794, %v1793, %v1788
        %v1796 = vadd.s32 %v1714, 4294967200
        %v1797 = vlaneseq
        %v1798 = vshrl.u32 %v1797, 7
        %v1799 = vsub.s32 %v1796, %v1798
        %v1800 = vrot.slane %v1597, %v1799
        %vm1801 = vcmask 851712
        %v1802 = vsel %vm1801, %v1800, %v1795
        %v1803 = vadd.s32 %v1714, 4294967192
        %v1804 = vlaneseq
        %v1805 = vshrl.u32 %v1804, 7
        %v1806 = vsub.s32 %v1803, %v1805
        %v1807 = vrot.slane %v1598, %v1806
        %vm1808 = vcmask 917312
        %v1809 = vsel %vm1808, %v1807, %v1802
        %v1810 = vadd.s32 %v1714, 4294967184
        %v1811 = vlaneseq
        %v1812 = vshrl.u32 %v1811, 7
        %v1813 = vsub.s32 %v1810, %v1812
        %v1814 = vrot.slane %v1599, %v1813
        %vm1815 = vcmask 982912
        %v1816 = vsel %vm1815, %v1814, %v1809
        %v1817 = vadd.s32 %v1714, 4294967176
        %v1818 = vlaneseq
        %v1819 = vshrl.u32 %v1818, 7
        %v1820 = vsub.s32 %v1817, %v1819
        %v1821 = vrot.slane %v1600, %v1820
        %vm1822 = vcmask 1048512
        %v1823 = vsel %vm1822, %v1821, %v1816
        %v1824 = vlaneseq
        %v1825 = vshrl.u32 %v1824, 7
        %v1826 = vsub.s32 %v1714, %v1825
        %v1827 = vrot.slane %v1601, %v1826
        %v1828 = vlaneseq
        %v1829 = vshrl.u32 %v1828, 7
        %v1830 = vsub.s32 %v1719, %v1829
        %v1831 = vrot.slane %v1602, %v1830
        %v1832 = vsel %vm1724, %v1831, %v1827
        %v1833 = vlaneseq
        %v1834 = vshrl.u32 %v1833, 7
        %v1835 = vsub.s32 %v1726, %v1834
        %v1836 = vrot.slane %v1603, %v1835
        %v1837 = vsel %vm1731, %v1836, %v1832
        %v1838 = vlaneseq
        %v1839 = vshrl.u32 %v1838, 7
        %v1840 = vsub.s32 %v1733, %v1839
        %v1841 = vrot.slane %v1604, %v1840
        %v1842 = vsel %vm1738, %v1841, %v1837
        %v1843 = vlaneseq
        %v1844 = vshrl.u32 %v1843, 7
        %v1845 = vsub.s32 %v1740, %v1844
        %v1846 = vrot.slane %v1605, %v1845
        %v1847 = vsel %vm1745, %v1846, %v1842
        %v1848 = vlaneseq
        %v1849 = vshrl.u32 %v1848, 7
        %v1850 = vsub.s32 %v1747, %v1849
        %v1851 = vrot.slane %v1606, %v1850
        %v1852 = vsel %vm1752, %v1851, %v1847
        %v1853 = vlaneseq
        %v1854 = vshrl.u32 %v1853, 7
        %v1855 = vsub.s32 %v1754, %v1854
        %v1856 = vrot.slane %v1607, %v1855
        %v1857 = vsel %vm1759, %v1856, %v1852
        %v1858 = vlaneseq
        %v1859 = vshrl.u32 %v1858, 7
        %v1860 = vsub.s32 %v1761, %v1859
        %v1861 = vrot.slane %v1608, %v1860
        %v1862 = vsel %vm1766, %v1861, %v1857
        %v1863 = vlaneseq
        %v1864 = vshrl.u32 %v1863, 7
        %v1865 = vsub.s32 %v1768, %v1864
        %v1866 = vrot.slane %v1609, %v1865
        %v1867 = vsel %vm1773, %v1866, %v1862
        %v1868 = vlaneseq
        %v1869 = vshrl.u32 %v1868, 7
        %v1870 = vsub.s32 %v1775, %v1869
        %v1871 = vrot.slane %v1610, %v1870
        %v1872 = vsel %vm1780, %v1871, %v1867
        %v1873 = vlaneseq
        %v1874 = vshrl.u32 %v1873, 7
        %v1875 = vsub.s32 %v1782, %v1874
        %v1876 = vrot.slane %v1611, %v1875
        %v1877 = vsel %vm1787, %v1876, %v1872
        %v1878 = vlaneseq
        %v1879 = vshrl.u32 %v1878, 7
        %v1880 = vsub.s32 %v1789, %v1879
        %v1881 = vrot.slane %v1612, %v1880
        %v1882 = vsel %vm1794, %v1881, %v1877
        %v1883 = vlaneseq
        %v1884 = vshrl.u32 %v1883, 7
        %v1885 = vsub.s32 %v1796, %v1884
        %v1886 = vrot.slane %v1613, %v1885
        %v1887 = vsel %vm1801, %v1886, %v1882
        %v1888 = vlaneseq
        %v1889 = vshrl.u32 %v1888, 7
        %v1890 = vsub.s32 %v1803, %v1889
        %v1891 = vrot.slane %v1614, %v1890
        %v1892 = vsel %vm1808, %v1891, %v1887
        %v1893 = vlaneseq
        %v1894 = vshrl.u32 %v1893, 7
        %v1895 = vsub.s32 %v1810, %v1894
        %v1896 = vrot.slane %v1615, %v1895
        %v1897 = vsel %vm1815, %v1896, %v1892
        %v1898 = vlaneseq
        %v1899 = vshrl.u32 %v1898, 7
        %v1900 = vsub.s32 %v1817, %v1899
        %v1901 = vrot.slane %v1616, %v1900
        %v1902 = vsel %vm1822, %v1901, %v1897
        %v1903 = vlaneseq
        %v1904 = vshrl.u32 %v1903, 7
        %v1905 = vsub.s32 %v1714, %v1904
        %v1906 = vrot.slane %v1617, %v1905
        %v1907 = vlaneseq
        %v1908 = vshrl.u32 %v1907, 7
        %v1909 = vsub.s32 %v1719, %v1908
        %v1910 = vrot.slane %v1618, %v1909
        %v1911 = vsel %vm1724, %v1910, %v1906
        %v1912 = vlaneseq
        %v1913 = vshrl.u32 %v1912, 7
        %v1914 = vsub.s32 %v1726, %v1913
        %v1915 = vrot.slane %v1619, %v1914
        %v1916 = vsel %vm1731, %v1915, %v1911
        %v1917 = vlaneseq
        %v1918 = vshrl.u32 %v1917, 7
        %v1919 = vsub.s32 %v1733, %v1918
        %v1920 = vrot.slane %v1620, %v1919
        %v1921 = vsel %vm1738, %v1920, %v1916
        %v1922 = vlaneseq
        %v1923 = vshrl.u32 %v1922, 7
        %v1924 = vsub.s32 %v1740, %v1923
        %v1925 = vrot.slane %v1621, %v1924
        %v1926 = vsel %vm1745, %v1925, %v1921
        %v1927 = vlaneseq
        %v1928 = vshrl.u32 %v1927, 7
        %v1929 = vsub.s32 %v1747, %v1928
        %v1930 = vrot.slane %v1622, %v1929
        %v1931 = vsel %vm1752, %v1930, %v1926
        %v1932 = vlaneseq
        %v1933 = vshrl.u32 %v1932, 7
        %v1934 = vsub.s32 %v1754, %v1933
        %v1935 = vrot.slane %v1623, %v1934
        %v1936 = vsel %vm1759, %v1935, %v1931
        %v1937 = vlaneseq
        %v1938 = vshrl.u32 %v1937, 7
        %v1939 = vsub.s32 %v1761, %v1938
        %v1940 = vrot.slane %v1624, %v1939
        %v1941 = vsel %vm1766, %v1940, %v1936
        %v1942 = vlaneseq
        %v1943 = vshrl.u32 %v1942, 7
        %v1944 = vsub.s32 %v1768, %v1943
        %v1945 = vrot.slane %v1625, %v1944
        %v1946 = vsel %vm1773, %v1945, %v1941
        %v1947 = vlaneseq
        %v1948 = vshrl.u32 %v1947, 7
        %v1949 = vsub.s32 %v1775, %v1948
        %v1950 = vrot.slane %v1626, %v1949
        %v1951 = vsel %vm1780, %v1950, %v1946
        %v1952 = vlaneseq
        %v1953 = vshrl.u32 %v1952, 7
        %v1954 = vsub.s32 %v1782, %v1953
        %v1955 = vrot.slane %v1627, %v1954
        %v1956 = vsel %vm1787, %v1955, %v1951
        %v1957 = vlaneseq
        %v1958 = vshrl.u32 %v1957, 7
        %v1959 = vsub.s32 %v1789, %v1958
        %v1960 = vrot.slane %v1628, %v1959
        %v1961 = vsel %vm1794, %v1960, %v1956
        %v1962 = vlaneseq
        %v1963 = vshrl.u32 %v1962, 7
        %v1964 = vsub.s32 %v1796, %v1963
        %v1965 = vrot.slane %v1629, %v1964
        %v1966 = vsel %vm1801, %v1965, %v1961
        %v1967 = vlaneseq
        %v1968 = vshrl.u32 %v1967, 7
        %v1969 = vsub.s32 %v1803, %v1968
        %v1970 = vrot.slane %v1630, %v1969
        %v1971 = vsel %vm1808, %v1970, %v1966
        %v1972 = vlaneseq
        %v1973 = vshrl.u32 %v1972, 7
        %v1974 = vsub.s32 %v1810, %v1973
        %v1975 = vrot.slane %v1631, %v1974
        %v1976 = vsel %vm1815, %v1975, %v1971
        %v1977 = vlaneseq
        %v1978 = vshrl.u32 %v1977, 7
        %v1979 = vsub.s32 %v1817, %v1978
        %v1980 = vrot.slane %v1632, %v1979
        %v1981 = vsel %vm1822, %v1980, %v1976
        %v1982 = vlaneseq
        %v1983 = vshrl.u32 %v1982, 7
        %v1984 = vsub.s32 %v1714, %v1983
        %v1985 = vrot.slane %v1633, %v1984
        %v1986 = vlaneseq
        %v1987 = vshrl.u32 %v1986, 7
        %v1988 = vsub.s32 %v1719, %v1987
        %v1989 = vrot.slane %v1634, %v1988
        %v1990 = vsel %vm1724, %v1989, %v1985
        %v1991 = vlaneseq
        %v1992 = vshrl.u32 %v1991, 7
        %v1993 = vsub.s32 %v1726, %v1992
        %v1994 = vrot.slane %v1635, %v1993
        %v1995 = vsel %vm1731, %v1994, %v1990
        %v1996 = vlaneseq
        %v1997 = vshrl.u32 %v1996, 7
        %v1998 = vsub.s32 %v1733, %v1997
        %v1999 = vrot.slane %v1636, %v1998
        %v2000 = vsel %vm1738, %v1999, %v1995
        %v2001 = vlaneseq
        %v2002 = vshrl.u32 %v2001, 7
        %v2003 = vsub.s32 %v1740, %v2002
        %v2004 = vrot.slane %v1637, %v2003
        %v2005 = vsel %vm1745, %v2004, %v2000
        %v2006 = vlaneseq
        %v2007 = vshrl.u32 %v2006, 7
        %v2008 = vsub.s32 %v1747, %v2007
        %v2009 = vrot.slane %v1638, %v2008
        %v2010 = vsel %vm1752, %v2009, %v2005
        %v2011 = vlaneseq
        %v2012 = vshrl.u32 %v2011, 7
        %v2013 = vsub.s32 %v1754, %v2012
        %v2014 = vrot.slane %v1639, %v2013
        %v2015 = vsel %vm1759, %v2014, %v2010
        %v2016 = vlaneseq
        %v2017 = vshrl.u32 %v2016, 7
        %v2018 = vsub.s32 %v1761, %v2017
        %v2019 = vrot.slane %v1640, %v2018
        %v2020 = vsel %vm1766, %v2019, %v2015
        %v2021 = vlaneseq
        %v2022 = vshrl.u32 %v2021, 7
        %v2023 = vsub.s32 %v1768, %v2022
        %v2024 = vrot.slane %v1641, %v2023
        %v2025 = vsel %vm1773, %v2024, %v2020
        %v2026 = vlaneseq
        %v2027 = vshrl.u32 %v2026, 7
        %v2028 = vsub.s32 %v1775, %v2027
        %v2029 = vrot.slane %v1642, %v2028
        %v2030 = vsel %vm1780, %v2029, %v2025
        %v2031 = vlaneseq
        %v2032 = vshrl.u32 %v2031, 7
        %v2033 = vsub.s32 %v1782, %v2032
        %v2034 = vrot.slane %v1643, %v2033
        %v2035 = vsel %vm1787, %v2034, %v2030
        %v2036 = vlaneseq
        %v2037 = vshrl.u32 %v2036, 7
        %v2038 = vsub.s32 %v1789, %v2037
        %v2039 = vrot.slane %v1644, %v2038
        %v2040 = vsel %vm1794, %v2039, %v2035
        %v2041 = vlaneseq
        %v2042 = vshrl.u32 %v2041, 7
        %v2043 = vsub.s32 %v1796, %v2042
        %v2044 = vrot.slane %v1645, %v2043
        %v2045 = vsel %vm1801, %v2044, %v2040
        %v2046 = vlaneseq
        %v2047 = vshrl.u32 %v2046, 7
        %v2048 = vsub.s32 %v1803, %v2047
        %v2049 = vrot.slane %v1646, %v2048
        %v2050 = vsel %vm1808, %v2049, %v2045
        %v2051 = vlaneseq
        %v2052 = vshrl.u32 %v2051, 7
        %v2053 = vsub.s32 %v1810, %v2052
        %v2054 = vrot.slane %v1647, %v2053
        %v2055 = vsel %vm1815, %v2054, %v2050
        %v2056 = vlaneseq
        %v2057 = vshrl.u32 %v2056, 7
        %v2058 = vsub.s32 %v1817, %v2057
        %v2059 = vrot.slane %v1648, %v2058
        %v2060 = vsel %vm1822, %v2059, %v2055
        %v2061 = vlaneseq
        %v2062 = vshrl.u32 %v2061, 7
        %v2063 = vsub.s32 %v1714, %v2062
        %v2064 = vrot.slane %v1649, %v2063
        %v2065 = vlaneseq
        %v2066 = vshrl.u32 %v2065, 7
        %v2067 = vsub.s32 %v1719, %v2066
        %v2068 = vrot.slane %v1650, %v2067
        %v2069 = vsel %vm1724, %v2068, %v2064
        %v2070 = vlaneseq
        %v2071 = vshrl.u32 %v2070, 7
        %v2072 = vsub.s32 %v1726, %v2071
        %v2073 = vrot.slane %v1651, %v2072
        %v2074 = vsel %vm1731, %v2073, %v2069
        %v2075 = vlaneseq
        %v2076 = vshrl.u32 %v2075, 7
        %v2077 = vsub.s32 %v1733, %v2076
        %v2078 = vrot.slane %v1652, %v2077
        %v2079 = vsel %vm1738, %v2078, %v2074
        %v2080 = vlaneseq
        %v2081 = vshrl.u32 %v2080, 7
        %v2082 = vsub.s32 %v1740, %v2081
        %v2083 = vrot.slane %v1653, %v2082
        %v2084 = vsel %vm1745, %v2083, %v2079
        %v2085 = vlaneseq
        %v2086 = vshrl.u32 %v2085, 7
        %v2087 = vsub.s32 %v1747, %v2086
        %v2088 = vrot.slane %v1654, %v2087
        %v2089 = vsel %vm1752, %v2088, %v2084
        %v2090 = vlaneseq
        %v2091 = vshrl.u32 %v2090, 7
        %v2092 = vsub.s32 %v1754, %v2091
        %v2093 = vrot.slane %v1655, %v2092
        %v2094 = vsel %vm1759, %v2093, %v2089
        %v2095 = vlaneseq
        %v2096 = vshrl.u32 %v2095, 7
        %v2097 = vsub.s32 %v1761, %v2096
        %v2098 = vrot.slane %v1656, %v2097
        %v2099 = vsel %vm1766, %v2098, %v2094
        %v2100 = vlaneseq
        %v2101 = vshrl.u32 %v2100, 7
        %v2102 = vsub.s32 %v1768, %v2101
        %v2103 = vrot.slane %v1657, %v2102
        %v2104 = vsel %vm1773, %v2103, %v2099
        %v2105 = vlaneseq
        %v2106 = vshrl.u32 %v2105, 7
        %v2107 = vsub.s32 %v1775, %v2106
        %v2108 = vrot.slane %v1658, %v2107
        %v2109 = vsel %vm1780, %v2108, %v2104
        %v2110 = vlaneseq
        %v2111 = vshrl.u32 %v2110, 7
        %v2112 = vsub.s32 %v1782, %v2111
        %v2113 = vrot.slane %v1659, %v2112
        %v2114 = vsel %vm1787, %v2113, %v2109
        %v2115 = vlaneseq
        %v2116 = vshrl.u32 %v2115, 7
        %v2117 = vsub.s32 %v1789, %v2116
        %v2118 = vrot.slane %v1660, %v2117
        %v2119 = vsel %vm1794, %v2118, %v2114
        %v2120 = vlaneseq
        %v2121 = vshrl.u32 %v2120, 7
        %v2122 = vsub.s32 %v1796, %v2121
        %v2123 = vrot.slane %v1661, %v2122
        %v2124 = vsel %vm1801, %v2123, %v2119
        %v2125 = vlaneseq
        %v2126 = vshrl.u32 %v2125, 7
        %v2127 = vsub.s32 %v1803, %v2126
        %v2128 = vrot.slane %v1662, %v2127
        %v2129 = vsel %vm1808, %v2128, %v2124
        %v2130 = vlaneseq
        %v2131 = vshrl.u32 %v2130, 7
        %v2132 = vsub.s32 %v1810, %v2131
        %v2133 = vrot.slane %v1663, %v2132
        %v2134 = vsel %vm1815, %v2133, %v2129
        %v2135 = vlaneseq
        %v2136 = vshrl.u32 %v2135, 7
        %v2137 = vsub.s32 %v1817, %v2136
        %v2138 = vrot.slane %v1664, %v2137
        %v2139 = vsel %vm1822, %v2138, %v2134
        %v2140 = vlaneseq
        %v2141 = vshrl.u32 %v2140, 7
        %v2142 = vsub.s32 %v1714, %v2141
        %v2143 = vrot.slane %v1665, %v2142
        %v2144 = vlaneseq
        %v2145 = vshrl.u32 %v2144, 7
        %v2146 = vsub.s32 %v1719, %v2145
        %v2147 = vrot.slane %v1666, %v2146
        %v2148 = vsel %vm1724, %v2147, %v2143
        %v2149 = vlaneseq
        %v2150 = vshrl.u32 %v2149, 7
        %v2151 = vsub.s32 %v1726, %v2150
        %v2152 = vrot.slane %v1667, %v2151
        %v2153 = vsel %vm1731, %v2152, %v2148
        %v2154 = vlaneseq
        %v2155 = vshrl.u32 %v2154, 7
        %v2156 = vsub.s32 %v1733, %v2155
        %v2157 = vrot.slane %v1668, %v2156
        %v2158 = vsel %vm1738, %v2157, %v2153
        %v2159 = vlaneseq
        %v2160 = vshrl.u32 %v2159, 7
        %v2161 = vsub.s32 %v1740, %v2160
        %v2162 = vrot.slane %v1669, %v2161
        %v2163 = vsel %vm1745, %v2162, %v2158
        %v2164 = vlaneseq
        %v2165 = vshrl.u32 %v2164, 7
        %v2166 = vsub.s32 %v1747, %v2165
        %v2167 = vrot.slane %v1670, %v2166
        %v2168 = vsel %vm1752, %v2167, %v2163
        %v2169 = vlaneseq
        %v2170 = vshrl.u32 %v2169, 7
        %v2171 = vsub.s32 %v1754, %v2170
        %v2172 = vrot.slane %v1671, %v2171
        %v2173 = vsel %vm1759, %v2172, %v2168
        %v2174 = vlaneseq
        %v2175 = vshrl.u32 %v2174, 7
        %v2176 = vsub.s32 %v1761, %v2175
        %v2177 = vrot.slane %v1672, %v2176
        %v2178 = vsel %vm1766, %v2177, %v2173
        %v2179 = vlaneseq
        %v2180 = vshrl.u32 %v2179, 7
        %v2181 = vsub.s32 %v1768, %v2180
        %v2182 = vrot.slane %v1673, %v2181
        %v2183 = vsel %vm1773, %v2182, %v2178
        %v2184 = vlaneseq
        %v2185 = vshrl.u32 %v2184, 7
        %v2186 = vsub.s32 %v1775, %v2185
        %v2187 = vrot.slane %v1674, %v2186
        %v2188 = vsel %vm1780, %v2187, %v2183
        %v2189 = vlaneseq
        %v2190 = vshrl.u32 %v2189, 7
        %v2191 = vsub.s32 %v1782, %v2190
        %v2192 = vrot.slane %v1675, %v2191
        %v2193 = vsel %vm1787, %v2192, %v2188
        %v2194 = vlaneseq
        %v2195 = vshrl.u32 %v2194, 7
        %v2196 = vsub.s32 %v1789, %v2195
        %v2197 = vrot.slane %v1676, %v2196
        %v2198 = vsel %vm1794, %v2197, %v2193
        %v2199 = vlaneseq
        %v2200 = vshrl.u32 %v2199, 7
        %v2201 = vsub.s32 %v1796, %v2200
        %v2202 = vrot.slane %v1677, %v2201
        %v2203 = vsel %vm1801, %v2202, %v2198
        %v2204 = vlaneseq
        %v2205 = vshrl.u32 %v2204, 7
        %v2206 = vsub.s32 %v1803, %v2205
        %v2207 = vrot.slane %v1678, %v2206
        %v2208 = vsel %vm1808, %v2207, %v2203
        %v2209 = vlaneseq
        %v2210 = vshrl.u32 %v2209, 7
        %v2211 = vsub.s32 %v1810, %v2210
        %v2212 = vrot.slane %v1679, %v2211
        %v2213 = vsel %vm1815, %v2212, %v2208
        %v2214 = vlaneseq
        %v2215 = vshrl.u32 %v2214, 7
        %v2216 = vsub.s32 %v1817, %v2215
        %v2217 = vrot.slane %v1680, %v2216
        %v2218 = vsel %vm1822, %v2217, %v2213
        %v2219 = vlaneseq
        %v2220 = vshrl.u32 %v2219, 7
        %v2221 = vsub.s32 %v1714, %v2220
        %v2222 = vrot.slane %v1681, %v2221
        %v2223 = vlaneseq
        %v2224 = vshrl.u32 %v2223, 7
        %v2225 = vsub.s32 %v1719, %v2224
        %v2226 = vrot.slane %v1682, %v2225
        %v2227 = vsel %vm1724, %v2226, %v2222
        %v2228 = vlaneseq
        %v2229 = vshrl.u32 %v2228, 7
        %v2230 = vsub.s32 %v1726, %v2229
        %v2231 = vrot.slane %v1683, %v2230
        %v2232 = vsel %vm1731, %v2231, %v2227
        %v2233 = vlaneseq
        %v2234 = vshrl.u32 %v2233, 7
        %v2235 = vsub.s32 %v1733, %v2234
        %v2236 = vrot.slane %v1684, %v2235
        %v2237 = vsel %vm1738, %v2236, %v2232
        %v2238 = vlaneseq
        %v2239 = vshrl.u32 %v2238, 7
        %v2240 = vsub.s32 %v1740, %v2239
        %v2241 = vrot.slane %v1685, %v2240
        %v2242 = vsel %vm1745, %v2241, %v2237
        %v2243 = vlaneseq
        %v2244 = vshrl.u32 %v2243, 7
        %v2245 = vsub.s32 %v1747, %v2244
        %v2246 = vrot.slane %v1686, %v2245
        %v2247 = vsel %vm1752, %v2246, %v2242
        %v2248 = vlaneseq
        %v2249 = vshrl.u32 %v2248, 7
        %v2250 = vsub.s32 %v1754, %v2249
        %v2251 = vrot.slane %v1687, %v2250
        %v2252 = vsel %vm1759, %v2251, %v2247
        %v2253 = vlaneseq
        %v2254 = vshrl.u32 %v2253, 7
        %v2255 = vsub.s32 %v1761, %v2254
        %v2256 = vrot.slane %v1688, %v2255
        %v2257 = vsel %vm1766, %v2256, %v2252
        %v2258 = vlaneseq
        %v2259 = vshrl.u32 %v2258, 7
        %v2260 = vsub.s32 %v1768, %v2259
        %v2261 = vrot.slane %v1689, %v2260
        %v2262 = vsel %vm1773, %v2261, %v2257
        %v2263 = vlaneseq
        %v2264 = vshrl.u32 %v2263, 7
        %v2265 = vsub.s32 %v1775, %v2264
        %v2266 = vrot.slane %v1690, %v2265
        %v2267 = vsel %vm1780, %v2266, %v2262
        %v2268 = vlaneseq
        %v2269 = vshrl.u32 %v2268, 7
        %v2270 = vsub.s32 %v1782, %v2269
        %v2271 = vrot.slane %v1691, %v2270
        %v2272 = vsel %vm1787, %v2271, %v2267
        %v2273 = vlaneseq
        %v2274 = vshrl.u32 %v2273, 7
        %v2275 = vsub.s32 %v1789, %v2274
        %v2276 = vrot.slane %v1692, %v2275
        %v2277 = vsel %vm1794, %v2276, %v2272
        %v2278 = vlaneseq
        %v2279 = vshrl.u32 %v2278, 7
        %v2280 = vsub.s32 %v1796, %v2279
        %v2281 = vrot.slane %v1693, %v2280
        %v2282 = vsel %vm1801, %v2281, %v2277
        %v2283 = vlaneseq
        %v2284 = vshrl.u32 %v2283, 7
        %v2285 = vsub.s32 %v1803, %v2284
        %v2286 = vrot.slane %v1694, %v2285
        %v2287 = vsel %vm1808, %v2286, %v2282
        %v2288 = vlaneseq
        %v2289 = vshrl.u32 %v2288, 7
        %v2290 = vsub.s32 %v1810, %v2289
        %v2291 = vrot.slane %v1695, %v2290
        %v2292 = vsel %vm1815, %v2291, %v2287
        %v2293 = vlaneseq
        %v2294 = vshrl.u32 %v2293, 7
        %v2295 = vsub.s32 %v1817, %v2294
        %v2296 = vrot.slane %v1696, %v2295
        %v2297 = vsel %vm1822, %v2296, %v2292
        %v2298 = vlaneseq
        %v2299 = vshrl.u32 %v2298, 7
        %v2300 = vsub.s32 %v1714, %v2299
        %v2301 = vrot.slane %v1697, %v2300
        %v2302 = vlaneseq
        %v2303 = vshrl.u32 %v2302, 7
        %v2304 = vsub.s32 %v1719, %v2303
        %v2305 = vrot.slane %v1698, %v2304
        %v2306 = vsel %vm1724, %v2305, %v2301
        %v2307 = vlaneseq
        %v2308 = vshrl.u32 %v2307, 7
        %v2309 = vsub.s32 %v1726, %v2308
        %v2310 = vrot.slane %v1699, %v2309
        %v2311 = vsel %vm1731, %v2310, %v2306
        %v2312 = vlaneseq
        %v2313 = vshrl.u32 %v2312, 7
        %v2314 = vsub.s32 %v1733, %v2313
        %v2315 = vrot.slane %v1700, %v2314
        %v2316 = vsel %vm1738, %v2315, %v2311
        %v2317 = vlaneseq
        %v2318 = vshrl.u32 %v2317, 7
        %v2319 = vsub.s32 %v1740, %v2318
        %v2320 = vrot.slane %v1701, %v2319
        %v2321 = vsel %vm1745, %v2320, %v2316
        %v2322 = vlaneseq
        %v2323 = vshrl.u32 %v2322, 7
        %v2324 = vsub.s32 %v1747, %v2323
        %v2325 = vrot.slane %v1702, %v2324
        %v2326 = vsel %vm1752, %v2325, %v2321
        %v2327 = vlaneseq
        %v2328 = vshrl.u32 %v2327, 7
        %v2329 = vsub.s32 %v1754, %v2328
        %v2330 = vrot.slane %v1703, %v2329
        %v2331 = vsel %vm1759, %v2330, %v2326
        %v2332 = vlaneseq
        %v2333 = vshrl.u32 %v2332, 7
        %v2334 = vsub.s32 %v1761, %v2333
        %v2335 = vrot.slane %v1704, %v2334
        %v2336 = vsel %vm1766, %v2335, %v2331
        %v2337 = vlaneseq
        %v2338 = vshrl.u32 %v2337, 7
        %v2339 = vsub.s32 %v1768, %v2338
        %v2340 = vrot.slane %v1705, %v2339
        %v2341 = vsel %vm1773, %v2340, %v2336
        %v2342 = vlaneseq
        %v2343 = vshrl.u32 %v2342, 7
        %v2344 = vsub.s32 %v1775, %v2343
        %v2345 = vrot.slane %v1706, %v2344
        %v2346 = vsel %vm1780, %v2345, %v2341
        %v2347 = vlaneseq
        %v2348 = vshrl.u32 %v2347, 7
        %v2349 = vsub.s32 %v1782, %v2348
        %v2350 = vrot.slane %v1707, %v2349
        %v2351 = vsel %vm1787, %v2350, %v2346
        %v2352 = vlaneseq
        %v2353 = vshrl.u32 %v2352, 7
        %v2354 = vsub.s32 %v1789, %v2353
        %v2355 = vrot.slane %v1708, %v2354
        %v2356 = vsel %vm1794, %v2355, %v2351
        %v2357 = vlaneseq
        %v2358 = vshrl.u32 %v2357, 7
        %v2359 = vsub.s32 %v1796, %v2358
        %v2360 = vrot.slane %v1709, %v2359
        %v2361 = vsel %vm1801, %v2360, %v2356
        %v2362 = vlaneseq
        %v2363 = vshrl.u32 %v2362, 7
        %v2364 = vsub.s32 %v1803, %v2363
        %v2365 = vrot.slane %v1710, %v2364
        %v2366 = vsel %vm1808, %v2365, %v2361
        %v2367 = vlaneseq
        %v2368 = vshrl.u32 %v2367, 7
        %v2369 = vsub.s32 %v1810, %v2368
        %v2370 = vrot.slane %v1711, %v2369
        %v2371 = vsel %vm1815, %v2370, %v2366
        %v2372 = vlaneseq
        %v2373 = vshrl.u32 %v2372, 7
        %v2374 = vsub.s32 %v1817, %v2373
        %v2375 = vrot.slane %v1712, %v2374
        %v2376 = vsel %vm1822, %v2375, %v2371
        %vm2377 = vcmask 1041409
        %v2378 = vsel %vm2377, %v2139, %v1823
        %v2379 = vsel %vm2377, %v2218, %v1902
        %v2380 = vsel %vm2377, %v2297, %v1981
        %v2381 = vsel %vm2377, %v2376, %v2060
        %v2382 = vpack.c.b16 %v2378, %v2378
        %v2383 = vpack.c.b16 %v2379, %v2379
        %v2384 = vpack.c.b16 %v2380, %v2380
        %v2385 = vpack.c.b16 %v2381, %v2381
        %v2454 = vunpack.c.l.b16 %v1392
        %v2455 = vunpack.c.l.b16 %v1393
        %v2456 = vunpack.c.l.b16 %v1394
        %v2457 = vunpack.c.l.b16 %v1395
        %v2458 = vunpack.c.l.b16 %v1396
        %v2459 = vunpack.c.l.b16 %v1397
        %v2460 = vunpack.c.l.b16 %v1398
        %v2461 = vunpack.c.l.b16 %v1399
        %v2462 = vunpack.c.l.b16 %v1400
        %v2463 = vunpack.c.l.b16 %v1401
        %v2464 = vunpack.c.l.b16 %v1402
        %v2465 = vunpack.c.l.b16 %v1403
        %v2466 = vunpack.c.l.b16 %v1404
        %v2467 = vunpack.c.l.b16 %v1405
        %v2468 = vunpack.c.l.b16 %v1406
        %v2469 = vunpack.c.l.b16 %v1407
        %v2470 = vunpack.c.l.b16 %v1408
        %v2471 = vunpack.c.l.b16 %v1409
        %v2472 = vunpack.c.l.b16 %v1410
        %v2473 = vunpack.c.l.b16 %v1411
        %v2474 = vunpack.c.l.b16 %v1412
        %v2475 = vunpack.c.l.b16 %v1413
        %v2476 = vunpack.c.l.b16 %v1414
        %v2477 = vunpack.c.l.b16 %v1415
        %v2478 = vunpack.c.l.b16 %v1416
        %v2479 = vunpack.c.l.b16 %v1417
        %v2480 = vunpack.c.l.b16 %v1418
        %v2481 = vunpack.c.l.b16 %v1419
        %v2482 = vunpack.c.l.b16 %v1420
        %v2483 = vunpack.c.l.b16 %v1421
        %v2484 = vunpack.c.l.b16 %v1422
        %v2485 = vunpack.c.l.b16 %v1423
        %v2486 = vunpack.c.l.b16 %v1424
        %v2487 = vunpack.c.l.b16 %v1425
        %v2488 = vunpack.c.l.b16 %v1426
        %v2489 = vunpack.c.l.b16 %v1427
        %v2490 = vunpack.c.l.b16 %v1428
        %v2491 = vunpack.c.l.b16 %v1429
        %v2492 = vunpack.c.l.b16 %v1430
        %v2493 = vunpack.c.l.b16 %v1431
        %v2494 = vunpack.c.l.b16 %v1432
        %v2495 = vunpack.c.l.b16 %v1433
        %v2496 = vunpack.c.l.b16 %v1434
        %v2497 = vunpack.c.l.b16 %v1435
        %v2498 = vunpack.c.l.b16 %v1436
        %v2499 = vunpack.c.l.b16 %v1437
        %v2500 = vunpack.c.l.b16 %v1438
        %v2501 = vunpack.c.l.b16 %v1439
        %v2502 = vunpack.c.l.b16 %v1440
        %v2503 = vunpack.c.l.b16 %v1441
        %v2504 = vunpack.c.l.b16 %v1442
        %v2505 = vunpack.c.l.b16 %v1443
        %v2506 = vunpack.c.l.b16 %v1444
        %v2507 = vunpack.c.l.b16 %v1445
        %v2508 = vunpack.c.l.b16 %v1446
        %v2509 = vunpack.c.l.b16 %v1447
        %v2510 = vunpack.c.l.b16 %v1448
        %v2511 = vunpack.c.l.b16 %v1449
        %v2512 = vunpack.c.l.b16 %v1450
        %v2513 = vunpack.c.l.b16 %v1451
        %v2514 = vunpack.c.l.b16 %v1452
        %v2515 = vunpack.c.l.b16 %v1453
        %v2516 = vunpack.c.l.b16 %v1454
        %v2517 = vunpack.c.l.b16 %v1455
        %v2518 = vpack.c.b16 %v2455, %v2454
        %v2519 = vpack.c.b16 %v2457, %v2456
        %v2520 = vpack.c.b16 %v2459, %v2458
        %v2521 = vpack.c.b16 %v2461, %v2460
        %v2522 = vpack.c.b16 %v2463, %v2462
        %v2523 = vpack.c.b16 %v2465, %v2464
        %v2524 = vpack.c.b16 %v2467, %v2466
        %v2525 = vpack.c.b16 %v2469, %v2468
        %v2526 = vpack.c.b16 %v2471, %v2470
        %v2527 = vpack.c.b16 %v2473, %v2472
        %v2528 = vpack.c.b16 %v2475, %v2474
        %v2529 = vpack.c.b16 %v2477, %v2476
        %v2530 = vpack.c.b16 %v2479, %v2478
        %v2531 = vpack.c.b16 %v2481, %v2480
        %v2532 = vpack.c.b16 %v2483, %v2482
        %v2533 = vpack.c.b16 %v2485, %v2484
        %v2534 = vpack.c.b16 %v2487, %v2486
        %v2535 = vpack.c.b16 %v2489, %v2488
        %v2536 = vpack.c.b16 %v2491, %v2490
        %v2537 = vpack.c.b16 %v2493, %v2492
        %v2538 = vpack.c.b16 %v2495, %v2494
        %v2539 = vpack.c.b16 %v2497, %v2496
        %v2540 = vpack.c.b16 %v2499, %v2498
        %v2541 = vpack.c.b16 %v2501, %v2500
        %v2542 = vpack.c.b16 %v2503, %v2502
        %v2543 = vpack.c.b16 %v2505, %v2504
        %v2544 = vpack.c.b16 %v2507, %v2506
        %v2545 = vpack.c.b16 %v2509, %v2508
        %v2546 = vpack.c.b16 %v2511, %v2510
        %v2547 = vpack.c.b16 %v2513, %v2512
        %v2548 = vpack.c.b16 %v2515, %v2514
        %v2549 = vpack.c.b16 %v2517, %v2516
        %2582 = vmatprep.subr.bf16.mxu0 0
        %2583 = vmatpush1.bf16.msra.mxu0 %v2525
        %2584 = vmatprep.subr.bf16.mxu0 0
        %2585 = vmatpush1.bf16.msra.mxu0 %v2524
        %2586 = vmatprep.subr.bf16.mxu0 0
        %2587 = vmatpush1.bf16.msra.mxu0 %v2523
        %2588 = vmatprep.subr.bf16.mxu0 0
        %2589 = vmatpush1.bf16.msra.mxu0 %v2522
        %2590 = vmatprep.subr.bf16.mxu0 0
        %2591 = vmatpush1.bf16.msra.mxu0 %v2521
        %2592 = vmatprep.subr.bf16.mxu0 0
        %2593 = vmatpush1.bf16.msra.mxu0 %v2520
        %2594 = vmatprep.subr.bf16.mxu0 0
        %2595 = vmatpush1.bf16.msra.mxu0 %v2519
        %2596 = vmatprep.subr.bf16.mxu0 0
        %2597 = vmatpush1.bf16.msra.mxu0 %v2518
        %2598 = vmatprep.subr.bf16.mxu0 0
        %2599 = vmatpush2.bf16.msra.mxu0 %v2533
        %2600 = vmatprep.subr.bf16.mxu0 0
        %2601 = vmatpush2.bf16.msra.mxu0 %v2532
        %2602 = vmatprep.subr.bf16.mxu0 0
        %2603 = vmatpush2.bf16.msra.mxu0 %v2531
        %2604 = vmatprep.subr.bf16.mxu0 0
        %2605 = vmatpush2.bf16.msra.mxu0 %v2530
        %2606 = vmatprep.subr.bf16.mxu0 0
        %2607 = vmatpush2.bf16.msra.mxu0 %v2529
        %2608 = vmatprep.subr.bf16.mxu0 0
        %2609 = vmatpush2.bf16.msra.mxu0 %v2528
        %2610 = vmatprep.subr.bf16.mxu0 0
        %2611 = vmatpush2.bf16.msra.mxu0 %v2527
        %2612 = vmatprep.subr.bf16.mxu0 0
        %2613 = vmatpush2.bf16.msra.mxu0 %v2526
        %2614 = vmatprep.mubr.bf16.mxu0 %v2383
        %2615 = vmatmul.mubr.bf16.gmra.mxu0 %v2382
        %v2616 = vpop.f32.mrf.mxu0
        %v2617 = vadd.f32 0.0, %v2616
        %v2618 = vpop.f32.mrf.mxu0
        %v2619 = vpop.f32.mrf.mxu0
        %v2620 = vpop.f32.mrf.mxu0
        %2621 = vdwg.mxu0
        %2622 = vmatprep.subr.bf16.mxu0 0
        %2623 = vmatpush1.bf16.msra.mxu0 %v2541
        %2624 = vmatprep.subr.bf16.mxu0 0
        %2625 = vmatpush1.bf16.msra.mxu0 %v2540
        %2626 = vmatprep.subr.bf16.mxu0 0
        %2627 = vmatpush1.bf16.msra.mxu0 %v2539
        %2628 = vmatprep.subr.bf16.mxu0 0
        %2629 = vmatpush1.bf16.msra.mxu0 %v2538
        %2630 = vmatprep.subr.bf16.mxu0 0
        %2631 = vmatpush1.bf16.msra.mxu0 %v2537
        %2632 = vmatprep.subr.bf16.mxu0 0
        %2633 = vmatpush1.bf16.msra.mxu0 %v2536
        %2634 = vmatprep.subr.bf16.mxu0 0
        %2635 = vmatpush1.bf16.msra.mxu0 %v2535
        %2636 = vmatprep.subr.bf16.mxu0 0
        %2637 = vmatpush1.bf16.msra.mxu0 %v2534
        %2638 = vmatprep.subr.bf16.mxu0 0
        %2639 = vmatpush2.bf16.msra.mxu0 %v2549
        %2640 = vmatprep.subr.bf16.mxu0 0
        %2641 = vmatpush2.bf16.msra.mxu0 %v2548
        %2642 = vmatprep.subr.bf16.mxu0 0
        %2643 = vmatpush2.bf16.msra.mxu0 %v2547
        %2644 = vmatprep.subr.bf16.mxu0 0
        %2645 = vmatpush2.bf16.msra.mxu0 %v2546
        %2646 = vmatprep.subr.bf16.mxu0 0
        %2647 = vmatpush2.bf16.msra.mxu0 %v2545
        %2648 = vmatprep.subr.bf16.mxu0 0
        %2649 = vmatpush2.bf16.msra.mxu0 %v2544
        %2650 = vmatprep.subr.bf16.mxu0 0
        %2651 = vmatpush2.bf16.msra.mxu0 %v2543
        %2652 = vmatprep.subr.bf16.mxu0 0
        %2653 = vmatpush2.bf16.msra.mxu0 %v2542
        %2654 = vmatprep.mubr.bf16.mxu0 %v2385
        %2655 = vmatmul.mubr.bf16.gmra.mxu0 %v2384
        %v2656 = vpop.f32.mrf.mxu0
        %v2657 = vadd.f32 %v2617, %v2656
        %v2658 = vpop.f32.mrf.mxu0
        %v2659 = vpop.f32.mrf.mxu0
        %v2660 = vpop.f32.mrf.mxu0
        %2661 = vdwg.mxu0
        %v2662 = vadd.f32 %v1456, %v2657
        %2663 = vst [vmem:[#allocation3] sm:$0x3] %v2662
        // Predicated region
        $region78: #{resnext_head.1} parent=68 // pred_check
          %p2664 = pneg %p115
        $region79: #{resnext_head.1} parent=68 // pred_check_branch
          %2666 = sbr.rel (%p2664) target = $region81
        $region80: #{resnext_head.1} parent=68 // pred_region
          %s2668 = ssub.s32 32, 32
          %2669 = vsyncadd [#allocation4], %s2668
          %s2670 = smul.addr %s19, 32
          %s2671 = scalar_lea.hbm %s3, %s2670
          %s2673 = sshll.u32 [#allocation3], 4
          %s2674 = int_to_ptr.vmem [resolvable:$true] %s2673
          %2676 = dma.vmem_to_hbm [thread:$0]  %s2674, 32, %s2671, [#allocation4]
        $region81: #{resnext_head.1} parent=68 // pred_fallthru
          _
        // Predicated region
        $region82: #{resnext_head.1} parent=68 // pred_check
          %p2677 = pneg %p115
        $region83: #{resnext_head.1} parent=68 // pred_check_branch
          %2679 = sbr.rel (%p2677) target = $region85
        $region84: #{resnext_head.1} parent=68 // pred_region
          %2680 = dma.done [#allocation4], 32
        $region85: #{resnext_head.1} parent=68 // pred_fallthru
          _
      $region69: #{resnext_head.1} parent=5 // pred_fallthru
        _
      %p2681 = scmp.le.s32.totalorder 2, %s10
      // Predicated region
      $region86: #{resnext_head.1} parent=5 // pred_check
        %p2682 = pneg %p2681
      $region87: #{resnext_head.1} parent=5 // pred_check_branch
        %2684 = sbr.rel (%p2682) target = $region89
      $region88: #{resnext_head.1} parent=5 // pred_region
        %s2685 = ssub.s32 %s10, 2
      $region89: #{resnext_head.1} parent=5 // pred_fallthru
        _
    $region6: #{resnext_head.1} parent=1 // loop_footer
      %s14 = sadd.s32 1, %s10
    $region7: #{resnext_head.1} parent=1 // loop_footer_branch
      %9 = sbr.rel target = $region3
    $region8: #{resnext_head.1} parent=1 // loop_exit
      _
    %2686 = vsyncpa [#allocation4], 1
    %s2687 = scalar_lea.sflag [#allocation4], 1
    %2688 = vsyncpa %s2687, 1

</llo_original>
